<compile_context>
chip_gen: v7x
topology: tpu7x:2x2x1
jax: 0.10.0
libtpu: 0.0.40
codegen_flags: <defaults>
</compile_context>

<pallas_src>
import math
import functools

import jax
import jax.numpy as jnp
from jax import lax
from jax.experimental import pallas as pl
from jax.experimental.pallas import tpu as pltpu


def _round_up(x, m):
    return ((x + m - 1) // m) * m


def _gelu_new(x):
    # 0.5 * x * (1 + tanh(sqrt(2/pi) * (x + 0.044715 * x^3)))
    c = math.sqrt(2.0 / math.pi)
    return 0.5 * x * (1.0 + jnp.tanh(c * (x + 0.044715 * x * x * x)))


def mlp_kernel(x_ref, wfc_ref, bfc_ref, wproj_ref, bproj_ref, o_ref, acc_ref,
               *, nk, kc, compute_dtype):
    # Load the row tile once and cast to the MXU compute dtype on the VPU
    # (x stays in its native dtype in HBM -> single HBM read, no wrapper cast).
    x = x_ref[...].astype(compute_dtype)
    acc_ref[...] = jnp.zeros_like(acc_ref)

    def body(k, carry):
        off = pl.multiple_of(k * kc, kc)
        # c_fc chunk: (tm, nx) @ (nx, kc), f32 accumulation on the MXU.
        h = jnp.dot(x, wfc_ref[:, pl.ds(off, kc)],
                    preferred_element_type=jnp.float32)
        h = h + bfc_ref[:, pl.ds(off, kc)]          # bias add in f32
        h = _gelu_new(h)                            # gelu in f32 (tanh -> EUP)
        h = h.astype(compute_dtype)                 # back to bf16 for 2nd GEMM
        # c_proj chunk: (tm, kc) @ (kc, nx), accumulated in f32 VMEM scratch.
        acc_ref[...] += jnp.dot(h, wproj_ref[pl.ds(off, kc), :],
                                preferred_element_type=jnp.float32)
        return carry

    lax.fori_loop(0, nk, body, 0, unroll=(nk <= 8))

    # dropout(resid_pdrop) is identity at inference time.
    o_ref[...] = (acc_ref[...] + bproj_ref[...]).astype(o_ref.dtype)


@functools.partial(jax.jit,
                   static_argnames=("tm", "kc", "compute_dtype", "out_dtype"))
def mlp_forward(x, w_fc, b_fc, w_proj, b_proj, *, tm=256, kc=512,
                compute_dtype=jnp.bfloat16, out_dtype=None):
    """x: (batch, seq, nx) -> (batch, seq, nx)."""
    batch, seq, nx = x.shape
    n_state = w_fc.shape[1]
    if out_dtype is None:
        out_dtype = x.dtype
    M = batch * seq

    # --- row-tile sizing ----------------------------------------------------
    tm = max(8, min(_round_up(tm, 8), _round_up(M, 8)))
    # Give the row grid >= 2 steps when possible so v7x's 2 TCs both get work.
    if M > 128 and pl.cdiv(M, tm) < 2:
        tm = _round_up(pl.cdiv(M, 2), 128)
    grid_m = pl.cdiv(M, tm)

    # --- n_state chunking (kc must divide n_state, lane-aligned preferred) ---
    kc = min(kc, n_state)
    if n_state % kc != 0:
        kc = next((c for c in (512, 384, 256, 128)
                   if c <= kc and n_state % c == 0), n_state)
    nk = n_state // kc

    x2d = x.reshape(M, nx)                                    # no cast, no pad
    wfc = w_fc if w_fc.dtype == compute_dtype else w_fc.astype(compute_dtype)
    wproj = (w_proj if w_proj.dtype == compute_dtype
             else w_proj.astype(compute_dtype))
    bfc2 = b_fc.reshape(1, n_state).astype(jnp.float32)
    bproj2 = b_proj.reshape(1, nx).astype(jnp.float32)

    # --- VMEM budget (no double counting) ------------------------------------
    cd = jnp.dtype(compute_dtype).itemsize
    xd = jnp.dtype(x.dtype).itemsize
    od = jnp.dtype(out_dtype).itemsize
    weight_bytes = 2 * nx * n_state * cd                 # single-buffered
    bias_bytes = (n_state + nx) * 4                      # single-buffered, f32
    io_bytes = 2 * tm * nx * xd + 2 * tm * nx * od       # x/out double-buffered
    acc_bytes = tm * nx * 4                              # f32 accumulator scratch
    interm_bytes = tm * kc * (4 + cd)                    # per-chunk gelu slab
    footprint = weight_bytes + bias_bytes + io_bytes + acc_bytes + interm_bytes
    try:
        device_vmem = pltpu.get_tpu_info().vmem_capacity_bytes
    except Exception:
        device_vmem = 64 << 20                           # conservative (v7x)
    vmem_limit = int(min(max(footprint + (8 << 20), 32 << 20),
                         device_vmem - (4 << 20)))

    cost = pl.CostEstimate(
        flops=4 * M * nx * n_state,                      # two GEMMs, 2*M*K*N each
        transcendentals=M * n_state,                     # tanh per gelu element
        bytes_accessed=M * nx * (xd + od) + weight_bytes + bias_bytes,
    )

    kernel = functools.partial(mlp_kernel, nk=nk, kc=kc,
                               compute_dtype=compute_dtype)

    out2d = pl.pallas_call(
        kernel,
        out_shape=jax.ShapeDtypeStruct((M, nx), out_dtype),
        grid_spec=pltpu.PrefetchScalarGridSpec(
            num_scalar_prefetch=0,
            grid=(grid_m,),
            in_specs=[
                # x tile: streamed / double-buffered over the row grid.
                pl.BlockSpec((tm, nx), lambda i: (i, 0)),
                # Weights + biases: constant index_map -> never refetched;
                # single-buffered to halve their VMEM footprint.
                pl.BlockSpec((nx, n_state), lambda i: (0, 0),
                             pipeline_mode=pl.Buffered(buffer_count=1)),
                pl.BlockSpec((1, n_state), lambda i: (0, 0),
                             pipeline_mode=pl.Buffered(buffer_count=1)),
                pl.BlockSpec((n_state, nx), lambda i: (0, 0),
                             pipeline_mode=pl.Buffered(buffer_count=1)),
                pl.BlockSpec((1, nx), lambda i: (0, 0),
                             pipeline_mode=pl.Buffered(buffer_count=1)),
            ],
            out_specs=pl.BlockSpec((tm, nx), lambda i: (i, 0)),
            scratch_shapes=[pltpu.VMEM((tm, nx), jnp.float32)],
        ),
        compiler_params=pltpu.CompilerParams(
            dimension_semantics=("parallel",),
            vmem_limit_bytes=vmem_limit),
        cost_estimate=cost,
    )(x2d, wfc, bfc2, wproj, bproj2)

    return out2d.reshape(batch, seq, nx)


def reference_mlp(x, w_fc, b_fc, w_proj, b_proj):
    h = _gelu_new(jnp.einsum("bsd,df->bsf", x, w_fc) + b_fc)
    return jnp.einsum("bsf,fd->bsd", h, w_proj) + b_proj


if __name__ == "__main__":
    # Small config: n_embd (nx) = 128 (lane-dense output), n_state = 4 * nx,
    # batch=2, seq=128 -> M=256 rows so the parallel row grid gets 2 steps.
    batch, seq, nx = 2, 128, 128
    n_state = 4 * nx

    key = jax.random.PRNGKey(0)
    kx, k1, k2, k3, k4 = jax.random.split(key, 5)
    x = jax.random.normal(kx, (batch, seq, nx), dtype=jnp.float32)
    # Conv1D init: weight ~ N(0, 0.02); bias small-random to exercise the add.
    w_fc = 0.02 * jax.random.normal(k1, (nx, n_state), dtype=jnp.float32)
    b_fc = 0.02 * jax.random.normal(k2, (n_state,), dtype=jnp.float32)
    w_proj = 0.02 * jax.random.normal(k3, (n_state, nx), dtype=jnp.float32)
    b_proj = 0.02 * jax.random.normal(k4, (nx,), dtype=jnp.float32)

    # Pre-cast weights ONCE at "parameter load" time (perf review item):
    # avoids a per-call f32->bf16 HBM pass inside the jitted forward.
    w_fc_c = w_fc.astype(jnp.bfloat16)
    w_proj_c = w_proj.astype(jnp.bfloat16)

    # kc=256 -> nk=2 so the n_state-chunked accumulate loop is exercised.
    out = mlp_forward(x, w_fc_c, b_fc, w_proj_c, b_proj, tm=256, kc=256)
    jax.block_until_ready(out)

    ref = reference_mlp(x, w_fc, b_fc, w_proj, b_proj)
    assert out.shape == (batch, seq, nx)
    # bf16 MXU operands vs f32 reference -> loose (deliberate inference
    # precision tradeoff).
    assert jnp.allclose(out, ref, atol=3e-2, rtol=3e-2), "mismatch vs reference"

    # TODO(synk): dropout(resid_pdrop) omitted (inference / eval-mode identity).
    print("KERNEL_OK")
</pallas_src>

<mosaic_0001>
module attributes {stable_mosaic.version = 11 : i64} {
  func.func @mlp_kernel(%arg0: i32, %arg1: memref<128x128xf32, #tpu.memory_space<vmem>>, %arg2: memref<128x512xbf16, #tpu.memory_space<vmem>>, %arg3: memref<1x512xf32, #tpu.memory_space<vmem>>, %arg4: memref<512x128xbf16, #tpu.memory_space<vmem>>, %arg5: memref<1x128xf32, #tpu.memory_space<vmem>>, %arg6: memref<128x128xf32, #tpu.memory_space<vmem>>, %arg7: memref<128x128xf32, #tpu.memory_space<vmem>>) attributes {dimension_semantics = [#tpu.dimension_semantics<parallel>], iteration_bounds = array<i64: 2>, scalar_prefetch = 0 : i64, scratch_operands = 1 : i64, tpu.core_type = #tpu.core_type<tc>, window_params = [{transform_indices = @transform_0, window_bounds = array<i64: 128, 128>}, {pipeline_mode = #tpu.pipeline_mode<synchronous>, transform_indices = @transform_1, window_bounds = array<i64: 128, 512>}, {pipeline_mode = #tpu.pipeline_mode<synchronous>, transform_indices = @transform_2, window_bounds = array<i64: 1, 512>}, {pipeline_mode = #tpu.pipeline_mode<synchronous>, transform_indices = @transform_3, window_bounds = array<i64: 512, 128>}, {pipeline_mode = #tpu.pipeline_mode<synchronous>, transform_indices = @transform_4, window_bounds = array<i64: 1, 128>}, {transform_indices = @transform_5, window_bounds = array<i64: 128, 128>}]} {
    %c0 = arith.constant 0 : index
    %c0_0 = arith.constant 0 : index
    %0 = vector.load %arg1[%c0, %c0_0] : memref<128x128xf32, #tpu.memory_space<vmem>>, vector<128x128xf32>
    %1 = arith.truncf %0 : vector<128x128xf32> to vector<128x128xbf16>
    %cst = arith.constant 0.000000e+00 : f32
    %2 = vector.broadcast %cst : f32 to vector<128x128xf32>
    %c0_1 = arith.constant 0 : index
    %c0_2 = arith.constant 0 : index
    %3 = vector.load %arg7[%c0_1, %c0_2] : memref<128x128xf32, #tpu.memory_space<vmem>>, vector<128x128xf32>
    tpu.vector_store %arg7[%c0_1, %c0_2], %2 {strides = array<i32>} : memref<128x128xf32, #tpu.memory_space<vmem>>, vector<128x128xf32>,
    %c0_i32 = arith.constant 0 : i32
    %c256_i32 = arith.constant 256 : i32
    %4 = arith.muli %c0_i32, %c256_i32 : i32
    %5 = tpu.assume_multiple %4, 256 : i32
    %c0_3 = arith.constant 0 : index
    %6 = arith.index_cast %5 : i32 to index
    %7 = vector.load %arg2[%c0_3, %6] : memref<128x512xbf16, #tpu.memory_space<vmem>>, vector<128x256xbf16>
    %cst_4 = arith.constant dense<0.000000e+00> : vector<128x256xf32>
    %8 = tpu.matmul %1, %7, %cst_4 {dimension_numbers = #tpu.dot_dimension_numbers<[1], [0], [0], [1], [0, 0, 1, 1], [], []>} : vector<128x128xbf16>, vector<128x256xbf16>, vector<128x256xf32> -> vector<128x256xf32>
    %c0_5 = arith.constant 0 : index
    %9 = arith.index_cast %5 : i32 to index
    %10 = vector.load %arg3[%c0_5, %9] : memref<1x512xf32, #tpu.memory_space<vmem>>, vector<1x256xf32>
    %11 = vector.broadcast %10 : vector<1x256xf32> to vector<128x256xf32>
    %12 = arith.addf %8, %11 : vector<128x256xf32>
    %cst_6 = arith.constant 5.000000e-01 : f32
    %13 = vector.broadcast %cst_6 : f32 to vector<128x256xf32>
    %14 = arith.mulf %13, %12 : vector<128x256xf32>
    %cst_7 = arith.constant 4.471500e-02 : f32
    %15 = vector.broadcast %cst_7 : f32 to vector<128x256xf32>
    %16 = arith.mulf %15, %12 : vector<128x256xf32>
    %17 = arith.mulf %16, %12 : vector<128x256xf32>
    %18 = arith.mulf %17, %12 : vector<128x256xf32>
    %19 = arith.addf %12, %18 : vector<128x256xf32>
    %cst_8 = arith.constant 0.797884583 : f32
    %20 = vector.broadcast %cst_8 : f32 to vector<128x256xf32>
    %21 = arith.mulf %20, %19 : vector<128x256xf32>
    %22 = math.tanh %21 : vector<128x256xf32>
    %cst_9 = arith.constant 1.000000e+00 : f32
    %23 = vector.broadcast %cst_9 : f32 to vector<128x256xf32>
    %24 = arith.addf %23, %22 : vector<128x256xf32>
    %25 = arith.mulf %14, %24 : vector<128x256xf32>
    %26 = arith.truncf %25 : vector<128x256xf32> to vector<128x256xbf16>
    %c0_10 = arith.constant 0 : index
    %c0_11 = arith.constant 0 : index
    %27 = vector.load %arg7[%c0_10, %c0_11] : memref<128x128xf32, #tpu.memory_space<vmem>>, vector<128x128xf32>
    %28 = arith.index_cast %5 : i32 to index
    %c0_12 = arith.constant 0 : index
    %29 = vector.load %arg4[%28, %c0_12] : memref<512x128xbf16, #tpu.memory_space<vmem>>, vector<256x128xbf16>
    %cst_13 = arith.constant dense<0.000000e+00> : vector<128x128xf32>
    %30 = tpu.matmul %26, %29, %cst_13 {dimension_numbers = #tpu.dot_dimension_numbers<[1], [0], [0], [1], [0, 0, 1, 1], [], []>} : vector<128x256xbf16>, vector<256x128xbf16>, vector<128x128xf32> -> vector<128x128xf32>
    %31 = arith.addf %27, %30 : vector<128x128xf32>
    %c0_14 = arith.constant 0 : index
    %c0_15 = arith.constant 0 : index
    %32 = vector.load %arg7[%c0_14, %c0_15] : memref<128x128xf32, #tpu.memory_space<vmem>>, vector<128x128xf32>
    tpu.vector_store %arg7[%c0_14, %c0_15], %31 {strides = array<i32>} : memref<128x128xf32, #tpu.memory_space<vmem>>, vector<128x128xf32>,
    %c1_i32 = arith.constant 1 : i32
    %c256_i32_16 = arith.constant 256 : i32
    %33 = arith.muli %c1_i32, %c256_i32_16 : i32
    %34 = tpu.assume_multiple %33, 256 : i32
    %c0_17 = arith.constant 0 : index
    %35 = arith.index_cast %34 : i32 to index
    %36 = vector.load %arg2[%c0_17, %35] : memref<128x512xbf16, #tpu.memory_space<vmem>>, vector<128x256xbf16>
    %cst_18 = arith.constant dense<0.000000e+00> : vector<128x256xf32>
    %37 = tpu.matmul %1, %36, %cst_18 {dimension_numbers = #tpu.dot_dimension_numbers<[1], [0], [0], [1], [0, 0, 1, 1], [], []>} : vector<128x128xbf16>, vector<128x256xbf16>, vector<128x256xf32> -> vector<128x256xf32>
    %c0_19 = arith.constant 0 : index
    %38 = arith.index_cast %34 : i32 to index
    %39 = vector.load %arg3[%c0_19, %38] : memref<1x512xf32, #tpu.memory_space<vmem>>, vector<1x256xf32>
    %40 = vector.broadcast %39 : vector<1x256xf32> to vector<128x256xf32>
    %41 = arith.addf %37, %40 : vector<128x256xf32>
    %cst_20 = arith.constant 5.000000e-01 : f32
    %42 = vector.broadcast %cst_20 : f32 to vector<128x256xf32>
    %43 = arith.mulf %42, %41 : vector<128x256xf32>
    %cst_21 = arith.constant 4.471500e-02 : f32
    %44 = vector.broadcast %cst_21 : f32 to vector<128x256xf32>
    %45 = arith.mulf %44, %41 : vector<128x256xf32>
    %46 = arith.mulf %45, %41 : vector<128x256xf32>
    %47 = arith.mulf %46, %41 : vector<128x256xf32>
    %48 = arith.addf %41, %47 : vector<128x256xf32>
    %cst_22 = arith.constant 0.797884583 : f32
    %49 = vector.broadcast %cst_22 : f32 to vector<128x256xf32>
    %50 = arith.mulf %49, %48 : vector<128x256xf32>
    %51 = math.tanh %50 : vector<128x256xf32>
    %cst_23 = arith.constant 1.000000e+00 : f32
    %52 = vector.broadcast %cst_23 : f32 to vector<128x256xf32>
    %53 = arith.addf %52, %51 : vector<128x256xf32>
    %54 = arith.mulf %43, %53 : vector<128x256xf32>
    %55 = arith.truncf %54 : vector<128x256xf32> to vector<128x256xbf16>
    %c0_24 = arith.constant 0 : index
    %c0_25 = arith.constant 0 : index
    %56 = vector.load %arg7[%c0_24, %c0_25] : memref<128x128xf32, #tpu.memory_space<vmem>>, vector<128x128xf32>
    %57 = arith.index_cast %34 : i32 to index
    %c0_26 = arith.constant 0 : index
    %58 = vector.load %arg4[%57, %c0_26] : memref<512x128xbf16, #tpu.memory_space<vmem>>, vector<256x128xbf16>
    %cst_27 = arith.constant dense<0.000000e+00> : vector<128x128xf32>
    %59 = tpu.matmul %55, %58, %cst_27 {dimension_numbers = #tpu.dot_dimension_numbers<[1], [0], [0], [1], [0, 0, 1, 1], [], []>} : vector<128x256xbf16>, vector<256x128xbf16>, vector<128x128xf32> -> vector<128x128xf32>
    %60 = arith.addf %56, %59 : vector<128x128xf32>
    %c0_28 = arith.constant 0 : index
    %c0_29 = arith.constant 0 : index
    %61 = vector.load %arg7[%c0_28, %c0_29] : memref<128x128xf32, #tpu.memory_space<vmem>>, vector<128x128xf32>
    tpu.vector_store %arg7[%c0_28, %c0_29], %60 {strides = array<i32>} : memref<128x128xf32, #tpu.memory_space<vmem>>, vector<128x128xf32>,
    %c2_i32 = arith.constant 2 : i32
    %c0_30 = arith.constant 0 : index
    %c0_31 = arith.constant 0 : index
    %62 = vector.load %arg7[%c0_30, %c0_31] : memref<128x128xf32, #tpu.memory_space<vmem>>, vector<128x128xf32>
    %c0_32 = arith.constant 0 : index
    %c0_33 = arith.constant 0 : index
    %63 = vector.load %arg5[%c0_32, %c0_33] : memref<1x128xf32, #tpu.memory_space<vmem>>, vector<1x128xf32>
    %64 = vector.broadcast %63 : vector<1x128xf32> to vector<128x128xf32>
    %65 = arith.addf %62, %64 : vector<128x128xf32>
    %c0_34 = arith.constant 0 : index
    %c0_35 = arith.constant 0 : index
    %66 = vector.load %arg6[%c0_34, %c0_35] : memref<128x128xf32, #tpu.memory_space<vmem>>, vector<128x128xf32>
    tpu.vector_store %arg6[%c0_34, %c0_35], %65 {strides = array<i32>} : memref<128x128xf32, #tpu.memory_space<vmem>>, vector<128x128xf32>,
    return
  }
  func.func @transform_0(%arg0: i32) -> (i32, i32) {
    %c0_i32 = arith.constant 0 : i32
    %c0_i32_0 = arith.constant 0 : i32
    return %arg0, %c0_i32 : i32, i32
  }
  func.func @transform_1(%arg0: i32) -> (i32, i32) {
    %c0_i32 = arith.constant 0 : i32
    %c0_i32_0 = arith.constant 0 : i32
    %c0_i32_1 = arith.constant 0 : i32
    return %c0_i32, %c0_i32_0 : i32, i32
  }
  func.func @transform_2(%arg0: i32) -> (i32, i32) {
    %c0_i32 = arith.constant 0 : i32
    %c0_i32_0 = arith.constant 0 : i32
    %c0_i32_1 = arith.constant 0 : i32
    return %c0_i32, %c0_i32_0 : i32, i32
  }
  func.func @transform_3(%arg0: i32) -> (i32, i32) {
    %c0_i32 = arith.constant 0 : i32
    %c0_i32_0 = arith.constant 0 : i32
    %c0_i32_1 = arith.constant 0 : i32
    return %c0_i32, %c0_i32_0 : i32, i32
  }
  func.func @transform_4(%arg0: i32) -> (i32, i32) {
    %c0_i32 = arith.constant 0 : i32
    %c0_i32_0 = arith.constant 0 : i32
    %c0_i32_1 = arith.constant 0 : i32
    return %c0_i32, %c0_i32_0 : i32, i32
  }
  func.func @transform_5(%arg0: i32) -> (i32, i32) {
    %c0_i32 = arith.constant 0 : i32
    %c0_i32_0 = arith.constant 0 : i32
    return %arg0, %c0_i32 : i32, i32
  }
}

</mosaic_0001>

<llo_original>
// kernel: mlp_forward.1
$region0: #{mlp_forward.1}
  #allocation0 [shape = 'u32[]', space=smem, size = 0x4, offset = 0x4, fixed_abs, tag = 'smem constant byte address 0x4 - core index']
  #allocation1 [shape = 'u32[144,128]{1,0:T(1,128)}', space=vmem, size = 0x12000, scoped, tag = 'internal scratch']
  #allocation2 [shape = 'f32[128,128]{1,0:T(8,128)}', space=vmem, size = 0x10000, scoped, tag = 'scratch operand']
  %s0 = inlined_call_operand.hbm [shape: f32[256,128], index: 0, kind: input, shape index: {}]
  %s1 = inlined_call_operand.hbm [shape: bf16[128,512], index: 1, kind: input, shape index: {}]
  %s2 = inlined_call_operand.vmem [shape: f32[1,512], index: 2, kind: input, shape index: {}]
  %s3 = inlined_call_operand.hbm [shape: bf16[512,128], index: 3, kind: input, shape index: {}]
  %s4 = inlined_call_operand.vmem [shape: f32[1,128], index: 4, kind: input, shape index: {}]
  %s5 = inlined_call_operand.hbm [shape: f32[256,128], index: 5, kind: output, shape index: {}]
  %s6 = sld [smem:[#allocation0]]
  $region65: #{mlp_forward.1} parent=0
    _
  %s8 = ssub.s32 1, %s6
  %s9 = scalar_select 0, %s8, %s6
  $region1: #{mlp_forward.1} parent=0
    #allocation3 [shape = 'u8[131072]{0}', space=vmem, size = 0x20000, scoped, tag = 'input window, operand 0']
    #allocation4 [shape = 's32[2]{0}', space=sflag, size = 0x8, scoped, tag = 'scoped memory for mlp_forward.1']
    #allocation5 [shape = 's32[2]{0}', space=sflag, size = 0x8, scoped, tag = 'scoped memory for mlp_forward.1']
    #allocation6 [shape = 'u8[131072]{0}', space=vmem, size = 0x20000, scoped, tag = 'input window, operand 1, single buffered']
    #allocation7 [shape = 's32[1]{0}', space=sflag, size = 0x4, scoped, tag = 'scoped memory for mlp_forward.1']
    #allocation8 [shape = 'u8[131072]{0}', space=vmem, size = 0x20000, scoped, tag = 'input window, operand 3, single buffered']
    #allocation9 [shape = 'u8[131072]{0}', space=vmem, size = 0x20000, scoped, tag = 'output window, operand 0']
    %10 = vsyncpa [#allocation4], 0
    %s11 = scalar_lea.sflag [#allocation4], 1
    %12 = vsyncpa %s11, 0
    %13 = vsyncpa [#allocation7], 0
    %14 = vsyncpa [#allocation5], 0
    %s15 = scalar_lea.sflag [#allocation5], 1
    %16 = vsyncpa %s15, 0
    loop: start=0, step=1, limit=4
    $region2: #{mlp_forward.1} parent=1 // loop_pre_header
      _
    $region3: #{mlp_forward.1} parent=1 // loop_header
      %s18 = sphi 0, %s22
      %p19 = scmp.ge.s32.totalorder %s18, 4
      %s28 = sphi 0, %s30
      %s31 = sphi 0, %s28
      %s32 = sphi 0, %s31
      %s48 = sphi 0, %s32
      %s52 = sphi 0, %s52
      %s54 = sphi 0, %s52
      %s55 = sphi 0, %s54
      %s69 = sphi 0, %s55
      %s73 = sphi 0, %s73
      %s75 = sphi 0, %s73
      %s76 = sphi 0, %s75
      %s90 = sphi 0, %s76
      %s94 = sphi 0, %s94
      %s96 = sphi 0, %s94
      %s97 = sphi 0, %s96
      %s111 = sphi 0, %s97
      %s115 = sphi 0, %s115
      %s117 = sphi 0, %s115
      %s118 = sphi 0, %s117
      %s132 = sphi 0, %s118
      %s138 = sphi 0, %s140
      %s141 = sphi 0, %s138
      %s142 = sphi 0, %s141
      %s158 = sphi 0, %s142
    $region4: #{mlp_forward.1} parent=1 // loop_header_branch
      %21 = sbr.rel (%p19) target = $region8
    $region5: #{mlp_forward.1} parent=1 // loop_body
      %s23 = ssub.s32 %s18, 1
      %s24 = ssub.s32 %s18, 2
      %s25 = sadd.s32 %s18, 1
      %s26 = ssub.s32 %s18, %s25
      %p27 = scmp.eq.s32.totalorder %s26, 0
      %s29 = sadd.s32 %s28, 1
      %s30 = scalar_select %p27, %s28, %s29
      %p33 = pneg %p27
      %p34 = scmp.eq.s32.totalorder %s18, 1
      %p35 = por %p33, %p34
      %p36 = scmp.ne.s32.totalorder %s28, %s31
      %p37 = scmp.eq.s32.totalorder %s18, 0
      %p38 = por %p36, %p37
      %p39 = scmp.ne.s32.totalorder %s28, %s31
      %p40 = scmp.eq.s32.totalorder %s23, 1
      %p41 = por %p39, %p40
      %p42 = scmp.ne.s32.totalorder %s31, %s32
      %p43 = scmp.eq.s32.totalorder %s23, 0
      %p44 = por %p42, %p43
      %p45 = scmp.ne.s32.totalorder %s31, %s32
      %p46 = scmp.eq.s32.totalorder %s24, 1
      %p47 = por %p45, %p46
      %p49 = scmp.ne.s32.totalorder %s32, %s48
      %p50 = scmp.eq.s32.totalorder %s24, 0
      %p51 = por %p49, %p50
      %s53 = sadd.s32 %s52, 1
      %p56 = scmp.eq.s32.totalorder %s18, 1
      %p57 = scmp.ne.s32.totalorder %s52, %s54
      %p58 = scmp.eq.s32.totalorder %s18, 0
      %p59 = por %p57, %p58
      %p60 = scmp.ne.s32.totalorder %s52, %s54
      %p61 = scmp.eq.s32.totalorder %s23, 1
      %p62 = por %p60, %p61
      %p63 = scmp.ne.s32.totalorder %s54, %s55
      %p64 = scmp.eq.s32.totalorder %s23, 0
      %p65 = por %p63, %p64
      %p66 = scmp.ne.s32.totalorder %s54, %s55
      %p67 = scmp.eq.s32.totalorder %s24, 1
      %p68 = por %p66, %p67
      %p70 = scmp.ne.s32.totalorder %s55, %s69
      %p71 = scmp.eq.s32.totalorder %s24, 0
      %p72 = por %p70, %p71
      %s74 = sadd.s32 %s73, 1
      %p77 = scmp.eq.s32.totalorder %s18, 1
      %p78 = scmp.ne.s32.totalorder %s73, %s75
      %p79 = scmp.eq.s32.totalorder %s18, 0
      %p80 = por %p78, %p79
      %p81 = scmp.ne.s32.totalorder %s73, %s75
      %p82 = scmp.eq.s32.totalorder %s23, 1
      %p83 = por %p81, %p82
      %p84 = scmp.ne.s32.totalorder %s75, %s76
      %p85 = scmp.eq.s32.totalorder %s23, 0
      %p86 = por %p84, %p85
      %p87 = scmp.ne.s32.totalorder %s75, %s76
      %p88 = scmp.eq.s32.totalorder %s24, 1
      %p89 = por %p87, %p88
      %p91 = scmp.ne.s32.totalorder %s76, %s90
      %p92 = scmp.eq.s32.totalorder %s24, 0
      %p93 = por %p91, %p92
      %s95 = sadd.s32 %s94, 1
      %p98 = scmp.eq.s32.totalorder %s18, 1
      %p99 = scmp.ne.s32.totalorder %s94, %s96
      %p100 = scmp.eq.s32.totalorder %s18, 0
      %p101 = por %p99, %p100
      %p102 = scmp.ne.s32.totalorder %s94, %s96
      %p103 = scmp.eq.s32.totalorder %s23, 1
      %p104 = por %p102, %p103
      %p105 = scmp.ne.s32.totalorder %s96, %s97
      %p106 = scmp.eq.s32.totalorder %s23, 0
      %p107 = por %p105, %p106
      %p108 = scmp.ne.s32.totalorder %s96, %s97
      %p109 = scmp.eq.s32.totalorder %s24, 1
      %p110 = por %p108, %p109
      %p112 = scmp.ne.s32.totalorder %s97, %s111
      %p113 = scmp.eq.s32.totalorder %s24, 0
      %p114 = por %p112, %p113
      %s116 = sadd.s32 %s115, 1
      %p119 = scmp.eq.s32.totalorder %s18, 1
      %p120 = scmp.ne.s32.totalorder %s115, %s117
      %p121 = scmp.eq.s32.totalorder %s18, 0
      %p122 = por %p120, %p121
      %p123 = scmp.ne.s32.totalorder %s115, %s117
      %p124 = scmp.eq.s32.totalorder %s23, 1
      %p125 = por %p123, %p124
      %p126 = scmp.ne.s32.totalorder %s117, %s118
      %p127 = scmp.eq.s32.totalorder %s23, 0
      %p128 = por %p126, %p127
      %p129 = scmp.ne.s32.totalorder %s117, %s118
      %p130 = scmp.eq.s32.totalorder %s24, 1
      %p131 = por %p129, %p130
      %p133 = scmp.ne.s32.totalorder %s118, %s132
      %p134 = scmp.eq.s32.totalorder %s24, 0
      %p135 = por %p133, %p134
      %s136 = ssub.s32 %s18, %s25
      %p137 = scmp.eq.s32.totalorder %s136, 0
      %s139 = sadd.s32 %s138, 1
      %s140 = scalar_select %p137, %s138, %s139
      %p143 = pneg %p137
      %p144 = scmp.eq.s32.totalorder %s18, 1
      %p145 = por %p143, %p144
      %p146 = scmp.ne.s32.totalorder %s138, %s141
      %p147 = scmp.eq.s32.totalorder %s18, 0
      %p148 = por %p146, %p147
      %p149 = scmp.ne.s32.totalorder %s138, %s141
      %p150 = scmp.eq.s32.totalorder %s23, 1
      %p151 = por %p149, %p150
      %p152 = scmp.ne.s32.totalorder %s141, %s142
      %p153 = scmp.eq.s32.totalorder %s23, 0
      %p154 = por %p152, %p153
      %p155 = scmp.ne.s32.totalorder %s141, %s142
      %p156 = scmp.eq.s32.totalorder %s24, 1
      %p157 = por %p155, %p156
      %p159 = scmp.ne.s32.totalorder %s142, %s158
      %p160 = scmp.eq.s32.totalorder %s24, 0
      %p161 = por %p159, %p160
      %p162 = scmp.le.s32.totalorder 1, %s18
      %p163 = scmp.lt.s32.totalorder %s18, 3
      %p164 = pnand %p162, %p163
      %p165 = pneg %p164
      // Predicated region
      $region9: #{mlp_forward.1} parent=5 // pred_check
        _
      $region10: #{mlp_forward.1} parent=5 // pred_check_branch
        %167 = sbr.rel (%p164) target = $region12
      $region11: #{mlp_forward.1} parent=5 // pred_region
        %s168 = ssub.s32 %s18, 1
        // Predicated region
        $region13: #{mlp_forward.1} parent=11 // pred_check
          %p169 = pneg %p65
        $region14: #{mlp_forward.1} parent=11 // pred_check_branch
          %171 = sbr.rel (%p169) target = $region16
        $region15: #{mlp_forward.1} parent=11 // pred_region
          %s173 = ssub.s32 4096, 4096
          %174 = vsyncadd [#allocation7], %s173
          %s175 = sshll.u32 [#allocation6], 4
          %s176 = int_to_ptr.vmem [resolvable:$true] %s175
          %181 = dma.hbm_to_vmem [thread:$0]  %s1, 4096, %s176, [#allocation7], 256, 256, 16
        $region16: #{mlp_forward.1} parent=11 // pred_fallthru
          _
        // Predicated region
        $region17: #{mlp_forward.1} parent=11 // pred_check
          %p182 = pneg %p86
        $region18: #{mlp_forward.1} parent=11 // pred_check_branch
          %184 = sbr.rel (%p182) target = $region20
        $region19: #{mlp_forward.1} parent=11 // pred_region
          _
        $region20: #{mlp_forward.1} parent=11 // pred_fallthru
          _
        // Predicated region
        $region21: #{mlp_forward.1} parent=11 // pred_check
          %p185 = pneg %p107
        $region22: #{mlp_forward.1} parent=11 // pred_check_branch
          %187 = sbr.rel (%p185) target = $region24
        $region23: #{mlp_forward.1} parent=11 // pred_region
          %s189 = ssub.s32 4096, 4096
          %190 = vsyncadd [#allocation7], %s189
          %s191 = sshll.u32 [#allocation8], 4
          %s192 = int_to_ptr.vmem [resolvable:$true] %s191
          %197 = dma.hbm_to_vmem [thread:$0]  %s3, 4096, %s192, [#allocation7], 64, 64, 4
        $region24: #{mlp_forward.1} parent=11 // pred_fallthru
          _
        // Predicated region
        $region25: #{mlp_forward.1} parent=11 // pred_check
          %p198 = pneg %p128
        $region26: #{mlp_forward.1} parent=11 // pred_check_branch
          %200 = sbr.rel (%p198) target = $region28
        $region27: #{mlp_forward.1} parent=11 // pred_region
          _
        $region28: #{mlp_forward.1} parent=11 // pred_fallthru
          _
      $region12: #{mlp_forward.1} parent=5 // pred_fallthru
        _
      %p201 = scmp.lt.s32.totalorder %s18, 2
      // Predicated region
      $region29: #{mlp_forward.1} parent=5 // pred_check
        %p202 = pneg %p201
      $region30: #{mlp_forward.1} parent=5 // pred_check_branch
        %204 = sbr.rel (%p202) target = $region32
      $region31: #{mlp_forward.1} parent=5 // pred_region
        // Predicated region
        $region33: #{mlp_forward.1} parent=31 // pred_check
          %p205 = pneg %p38
        $region34: #{mlp_forward.1} parent=31 // pred_check_branch
          %207 = sbr.rel (%p205) target = $region36
        $region35: #{mlp_forward.1} parent=31 // pred_region
          %s208 = sand.u32 %s28, 1
          %s209 = scalar_lea.sflag [#allocation4], %s208
          %s210 = sand.u32 %s28, 1
          %s211 = smul.addr %s210, 128
          %s212 = scalar_lea.vmem [#allocation3], %s211
          %s213 = smul.u32 16, %s18
          %s215 = ssub.s32 2048, 2048
          %216 = vsyncadd %s209, %s215
          %s217 = smul.addr %s213, 128
          %s218 = scalar_lea.hbm %s0, %s217
          %s219 = sshll.u32 %s212, 4
          %s220 = int_to_ptr.vmem [resolvable:$true] %s219
          %225 = dma.hbm_to_vmem [thread:$0]  %s218, 2048, %s220, %s209, 128, 128, 8
        $region36: #{mlp_forward.1} parent=31 // pred_fallthru
          _
      $region32: #{mlp_forward.1} parent=5 // pred_fallthru
        _
      %p226 = scmp.le.s32.totalorder 1, %s18
      %p227 = scmp.lt.s32.totalorder %s18, 3
      %p228 = pnand %p226, %p227
      %p229 = pneg %p228
      // Predicated region
      $region37: #{mlp_forward.1} parent=5 // pred_check
        _
      $region38: #{mlp_forward.1} parent=5 // pred_check_branch
        %231 = sbr.rel (%p228) target = $region40
      $region39: #{mlp_forward.1} parent=5 // pred_region
        %s232 = ssub.s32 %s18, 1
        %s233 = sand.u32 %s31, 1
        %s234 = scalar_lea.sflag [#allocation4], %s233
        %s235 = sand.u32 %s31, 1
        %s236 = smul.addr %s235, 128
        %s237 = scalar_lea.vmem [#allocation3], %s236
        // Predicated region
        $region41: #{mlp_forward.1} parent=39 // pred_check
          %p238 = pneg %p44
        $region42: #{mlp_forward.1} parent=39 // pred_check_branch
          %240 = sbr.rel (%p238) target = $region44
        $region43: #{mlp_forward.1} parent=39 // pred_region
          %241 = dma.done %s234, 2048
        $region44: #{mlp_forward.1} parent=39 // pred_fallthru
          _
        // Predicated region
        $region45: #{mlp_forward.1} parent=39 // pred_check
          %p242 = pneg %p65
        $region46: #{mlp_forward.1} parent=39 // pred_check_branch
          %244 = sbr.rel (%p242) target = $region48
        $region47: #{mlp_forward.1} parent=39 // pred_region
          %245 = dma.done [#allocation7], 4096
        $region48: #{mlp_forward.1} parent=39 // pred_fallthru
          _
        // Predicated region
        $region49: #{mlp_forward.1} parent=39 // pred_check
          %p246 = pneg %p107
        $region50: #{mlp_forward.1} parent=39 // pred_check_branch
          %248 = sbr.rel (%p246) target = $region52
        $region51: #{mlp_forward.1} parent=39 // pred_region
          %249 = dma.done [#allocation7], 4096
        $region52: #{mlp_forward.1} parent=39 // pred_fallthru
          _
        %s250 = sand.u32 %s31, 1
        %s251 = scalar_lea.sflag [#allocation4], %s250
        %s252 = sand.u32 %s31, 1
        %s253 = smul.addr %s252, 128
        %s254 = scalar_lea.vmem [#allocation3], %s253
        %p255 = pneg %p44
        %p256 = pneg %p41
        %p257 = pneg %p65
        %p258 = pneg %p62
        %p259 = pneg %p86
        %p260 = pneg %p83
        %p261 = pneg %p107
        %p262 = pneg %p104
        %p263 = pneg %p128
        %p264 = pneg %p125
        %p265 = pneg %p154
        %p266 = pneg %p151
        %s267 = sand.u32 %s141, 1
        %s268 = scalar_lea.sflag [#allocation5], %s267
        %s269 = sand.u32 %s141, 1
        %s270 = smul.addr %s269, 128
        %s271 = scalar_lea.vmem [#allocation9], %s270
        %s272 = smul.u32 16, %s23
        %s273 = smul.u32 16, %s23
        %v275 = vld [vmem:[%s237] sm:$0xff]
        %v276 = vld [vmem:[%s237 + $0x8] sm:$0xff]
        %v277 = vld [vmem:[%s237 + $0x10] sm:$0xff]
        %v278 = vld [vmem:[%s237 + $0x18] sm:$0xff]
        %v279 = vld [vmem:[%s237 + $0x20] sm:$0xff]
        %v280 = vld [vmem:[%s237 + $0x28] sm:$0xff]
        %v281 = vld [vmem:[%s237 + $0x30] sm:$0xff]
        %v282 = vld [vmem:[%s237 + $0x38] sm:$0xff]
        %v283 = vld [vmem:[%s237 + $0x40] sm:$0xff]
        %v284 = vld [vmem:[%s237 + $0x48] sm:$0xff]
        %v285 = vld [vmem:[%s237 + $0x50] sm:$0xff]
        %v286 = vld [vmem:[%s237 + $0x58] sm:$0xff]
        %v287 = vld [vmem:[%s237 + $0x60] sm:$0xff]
        %v288 = vld [vmem:[%s237 + $0x68] sm:$0xff]
        %v289 = vld [vmem:[%s237 + $0x70] sm:$0xff]
        %v290 = vld [vmem:[%s237 + $0x78] sm:$0xff]
        %v291 = vpack.c.bf16 %v276, %v275
        %v292 = vpack.c.bf16 %v278, %v277
        %v293 = vpack.c.bf16 %v280, %v279
        %v294 = vpack.c.bf16 %v282, %v281
        %v295 = vpack.c.bf16 %v284, %v283
        %v296 = vpack.c.bf16 %v286, %v285
        %v297 = vpack.c.bf16 %v288, %v287
        %v298 = vpack.c.bf16 %v290, %v289
        %299 = vst [vmem:[#allocation2] sm:$0xff] 0.0
        %300 = vst [vmem:[#allocation2 + $0x8] sm:$0xff] 0.0
        %301 = vst [vmem:[#allocation2 + $0x10] sm:$0xff] 0.0
        %302 = vst [vmem:[#allocation2 + $0x18] sm:$0xff] 0.0
        %303 = vst [vmem:[#allocation2 + $0x20] sm:$0xff] 0.0
        %304 = vst [vmem:[#allocation2 + $0x28] sm:$0xff] 0.0
        %305 = vst [vmem:[#allocation2 + $0x30] sm:$0xff] 0.0
        %306 = vst [vmem:[#allocation2 + $0x38] sm:$0xff] 0.0
        %307 = vst [vmem:[#allocation2 + $0x40] sm:$0xff] 0.0
        %308 = vst [vmem:[#allocation2 + $0x48] sm:$0xff] 0.0
        %309 = vst [vmem:[#allocation2 + $0x50] sm:$0xff] 0.0
        %310 = vst [vmem:[#allocation2 + $0x58] sm:$0xff] 0.0
        %311 = vst [vmem:[#allocation2 + $0x60] sm:$0xff] 0.0
        %312 = vst [vmem:[#allocation2 + $0x68] sm:$0xff] 0.0
        %313 = vst [vmem:[#allocation2 + $0x70] sm:$0xff] 0.0
        %314 = vst [vmem:[#allocation2 + $0x78] sm:$0xff] 0.0
        %v315 = vld [vmem:[#allocation6] sm:$0xff]
        %v316 = vld [vmem:[#allocation6 + $0x10] sm:$0xff]
        %v317 = vld [vmem:[#allocation6 + $0x20] sm:$0xff]
        %v318 = vld [vmem:[#allocation6 + $0x30] sm:$0xff]
        %v319 = vld [vmem:[#allocation6 + $0x40] sm:$0xff]
        %v320 = vld [vmem:[#allocation6 + $0x50] sm:$0xff]
        %v321 = vld [vmem:[#allocation6 + $0x60] sm:$0xff]
        %v322 = vld [vmem:[#allocation6 + $0x70] sm:$0xff]
        %v323 = vld [vmem:[#allocation6 + $0x80] sm:$0xff]
        %v324 = vld [vmem:[#allocation6 + $0x90] sm:$0xff]
        %v325 = vld [vmem:[#allocation6 + $0xa0] sm:$0xff]
        %v326 = vld [vmem:[#allocation6 + $0xb0] sm:$0xff]
        %v327 = vld [vmem:[#allocation6 + $0xc0] sm:$0xff]
        %v328 = vld [vmem:[#allocation6 + $0xd0] sm:$0xff]
        %v329 = vld [vmem:[#allocation6 + $0xe0] sm:$0xff]
        %v330 = vld [vmem:[#allocation6 + $0xf0] sm:$0xff]
        %v331 = vld [vmem:[%s2] sm:$0x3]
        %v333 = vlaneseq
        %v334 = vshrl.u32 %v333, 7
        %v335 = vsub.s32 0, %v334
        %v336 = vrot.slane %v331, %v335
        %v337 = vlaneseq
        %v338 = vshrl.u32 %v337, 7
        %v339 = vsub.s32 1, %v338
        %v340 = vrot.slane %v331, %v339
        %v359 = vunpack.c.l.b16 %v315
        %v360 = vunpack.c.h.b16 %v315
        %v361 = vunpack.c.l.b16 %v316
        %v362 = vunpack.c.h.b16 %v316
        %v363 = vunpack.c.l.b16 %v317
        %v364 = vunpack.c.h.b16 %v317
        %v365 = vunpack.c.l.b16 %v318
        %v366 = vunpack.c.h.b16 %v318
        %v367 = vunpack.c.l.b16 %v319
        %v368 = vunpack.c.h.b16 %v319
        %v369 = vunpack.c.l.b16 %v320
        %v370 = vunpack.c.h.b16 %v320
        %v371 = vunpack.c.l.b16 %v321
        %v372 = vunpack.c.h.b16 %v321
        %v373 = vunpack.c.l.b16 %v322
        %v374 = vunpack.c.h.b16 %v322
        %v375 = vunpack.c.l.b16 %v323
        %v376 = vunpack.c.h.b16 %v323
        %v377 = vunpack.c.l.b16 %v324
        %v378 = vunpack.c.h.b16 %v324
        %v379 = vunpack.c.l.b16 %v325
        %v380 = vunpack.c.h.b16 %v325
        %v381 = vunpack.c.l.b16 %v326
        %v382 = vunpack.c.h.b16 %v326
        %v383 = vunpack.c.l.b16 %v327
        %v384 = vunpack.c.h.b16 %v327
        %v385 = vunpack.c.l.b16 %v328
        %v386 = vunpack.c.h.b16 %v328
        %v387 = vunpack.c.l.b16 %v329
        %v388 = vunpack.c.h.b16 %v329
        %v389 = vunpack.c.l.b16 %v330
        %v390 = vunpack.c.h.b16 %v330
        %v391 = vpack.c.b16 %v361, %v359
        %v392 = vpack.c.b16 %v362, %v360
        %v393 = vpack.c.b16 %v365, %v363
        %v394 = vpack.c.b16 %v366, %v364
        %v395 = vpack.c.b16 %v369, %v367
        %v396 = vpack.c.b16 %v370, %v368
        %v397 = vpack.c.b16 %v373, %v371
        %v398 = vpack.c.b16 %v374, %v372
        %v399 = vpack.c.b16 %v377, %v375
        %v400 = vpack.c.b16 %v378, %v376
        %v401 = vpack.c.b16 %v381, %v379
        %v402 = vpack.c.b16 %v382, %v380
        %v403 = vpack.c.b16 %v385, %v383
        %v404 = vpack.c.b16 %v386, %v384
        %v405 = vpack.c.b16 %v389, %v387
        %v406 = vpack.c.b16 %v390, %v388
        %423 = vmatprep.subr.bf16.mxu0 %v392
        %424 = vmatpush1.bf16.msra.mxu0 %v391
        %425 = vmatprep.subr.bf16.mxu0 %v394
        %426 = vmatpush1.bf16.msra.mxu0 %v393
        %427 = vmatprep.subr.bf16.mxu0 %v396
        %428 = vmatpush1.bf16.msra.mxu0 %v395
        %429 = vmatprep.subr.bf16.mxu0 %v398
        %430 = vmatpush1.bf16.msra.mxu0 %v397
        %431 = vmatprep.subr.bf16.mxu0 %v400
        %432 = vmatpush1.bf16.msra.mxu0 %v399
        %433 = vmatprep.subr.bf16.mxu0 %v402
        %434 = vmatpush1.bf16.msra.mxu0 %v401
        %435 = vmatprep.subr.bf16.mxu0 %v404
        %436 = vmatpush1.bf16.msra.mxu0 %v403
        %437 = vmatprep.subr.bf16.mxu0 %v406
        %438 = vmatpush1.bf16.msra.mxu0 %v405
        %439 = vmatprep.subr.bf16.mxu0 0
        %440 = vmatpush1.bf16.msra.mxu0 0
        %441 = vmatprep.subr.bf16.mxu0 0
        %442 = vmatpush1.bf16.msra.mxu0 0
        %443 = vmatprep.subr.bf16.mxu0 0
        %444 = vmatpush1.bf16.msra.mxu0 0
        %445 = vmatprep.subr.bf16.mxu0 0
        %446 = vmatpush1.bf16.msra.mxu0 0
        %447 = vmatprep.subr.bf16.mxu0 0
        %448 = vmatpush1.bf16.msra.mxu0 0
        %449 = vmatprep.subr.bf16.mxu0 0
        %450 = vmatpush1.bf16.msra.mxu0 0
        %451 = vmatprep.subr.bf16.mxu0 0
        %452 = vmatpush1.bf16.msra.mxu0 0
        %453 = vmatprep.subr.bf16.mxu0 0
        %454 = vmatpush1.bf16.msra.mxu0 0
        %455 = vmatprep.mubr.bf16.mxu0 0
        %456 = vmatmul.mubr.bf16.gmra.mrb[0].mxu0 %v291
        %v457 = vpop.f32.mrb[0].mxu0
        %v458 = vadd.f32 %v336, %v457
        %v459 = vpop.f32.mrb[0].mxu0
        %v460 = vadd.f32 %v340, %v459
        %v461 = vpop.f32.mrb[0].mxu0
        %v462 = vadd.f32 %v336, %v461
        %v463 = vpop.f32.mrb[0].mxu0
        %v464 = vadd.f32 %v340, %v463
        %465 = vmatprep.mubr.bf16.mxu0 0
        %466 = vmatmul.mubr.bf16.gmra.mrb[0].mxu0 %v292
        %v467 = vpop.f32.mrb[0].mxu0
        %v468 = vadd.f32 %v336, %v467
        %v469 = vpop.f32.mrb[0].mxu0
        %v470 = vadd.f32 %v340, %v469
        %v471 = vpop.f32.mrb[0].mxu0
        %v472 = vadd.f32 %v336, %v471
        %v473 = vpop.f32.mrb[0].mxu0
        %v474 = vadd.f32 %v340, %v473
        %475 = vmatprep.mubr.bf16.mxu0 0
        %476 = vmatmul.mubr.bf16.gmra.mrb[0].mxu0 %v293
        %v477 = vpop.f32.mrb[0].mxu0
        %v478 = vadd.f32 %v336, %v477
        %v479 = vpop.f32.mrb[0].mxu0
        %v480 = vadd.f32 %v340, %v479
        %v481 = vpop.f32.mrb[0].mxu0
        %v482 = vadd.f32 %v336, %v481
        %v483 = vpop.f32.mrb[0].mxu0
        %v484 = vadd.f32 %v340, %v483
        %485 = vmatprep.mubr.bf16.mxu0 0
        %486 = vmatmul.mubr.bf16.gmra.mrb[0].mxu0 %v294
        %v487 = vpop.f32.mrb[0].mxu0
        %v488 = vadd.f32 %v336, %v487
        %v489 = vpop.f32.mrb[0].mxu0
        %v490 = vadd.f32 %v340, %v489
        %v491 = vpop.f32.mrb[0].mxu0
        %v492 = vadd.f32 %v336, %v491
        %v493 = vpop.f32.mrb[0].mxu0
        %v494 = vadd.f32 %v340, %v493
        %495 = vmatprep.mubr.bf16.mxu0 0
        %496 = vmatmul.mubr.bf16.gmra.mrb[0].mxu0 %v295
        %v497 = vpop.f32.mrb[0].mxu0
        %v498 = vadd.f32 %v336, %v497
        %v499 = vpop.f32.mrb[0].mxu0
        %v500 = vadd.f32 %v340, %v499
        %v501 = vpop.f32.mrb[0].mxu0
        %v502 = vadd.f32 %v336, %v501
        %v503 = vpop.f32.mrb[0].mxu0
        %v504 = vadd.f32 %v340, %v503
        %505 = vmatprep.mubr.bf16.mxu0 0
        %506 = vmatmul.mubr.bf16.gmra.mrb[0].mxu0 %v296
        %v507 = vpop.f32.mrb[0].mxu0
        %v508 = vadd.f32 %v336, %v507
        %v509 = vpop.f32.mrb[0].mxu0
        %v510 = vadd.f32 %v340, %v509
        %v511 = vpop.f32.mrb[0].mxu0
        %v512 = vadd.f32 %v336, %v511
        %v513 = vpop.f32.mrb[0].mxu0
        %v514 = vadd.f32 %v340, %v513
        %515 = vmatprep.mubr.bf16.mxu0 0
        %516 = vmatmul.mubr.bf16.gmra.mrb[0].mxu0 %v297
        %v517 = vpop.f32.mrb[0].mxu0
        %v518 = vadd.f32 %v336, %v517
        %v519 = vpop.f32.mrb[0].mxu0
        %v520 = vadd.f32 %v340, %v519
        %v521 = vpop.f32.mrb[0].mxu0
        %v522 = vadd.f32 %v336, %v521
        %v523 = vpop.f32.mrb[0].mxu0
        %v524 = vadd.f32 %v340, %v523
        %525 = vmatprep.mubr.bf16.mxu0 0
        %526 = vmatmul.mubr.bf16.gmra.mrb[0].mxu0 %v298
        %v527 = vpop.f32.mrb[0].mxu0
        %v528 = vadd.f32 %v336, %v527
        %v529 = vpop.f32.mrb[0].mxu0
        %v530 = vadd.f32 %v340, %v529
        %v531 = vpop.f32.mrb[0].mxu0
        %v532 = vadd.f32 %v336, %v531
        %v533 = vpop.f32.mrb[0].mxu0
        %v534 = vadd.f32 %v340, %v533
        %535 = vdwg.mxu0
        %v536 = vmul.f32 %v458, 0.5
        %v537 = vmul.f32 %v460, 0.5
        %v538 = vmul.f32 %v462, 0.5
        %v539 = vmul.f32 %v464, 0.5
        %v540 = vmul.f32 %v468, 0.5
        %v541 = vmul.f32 %v470, 0.5
        %v542 = vmul.f32 %v472, 0.5
        %v543 = vmul.f32 %v474, 0.5
        %v544 = vmul.f32 %v478, 0.5
        %v545 = vmul.f32 %v480, 0.5
        %v546 = vmul.f32 %v482, 0.5
        %v547 = vmul.f32 %v484, 0.5
        %v548 = vmul.f32 %v488, 0.5
        %v549 = vmul.f32 %v490, 0.5
        %v550 = vmul.f32 %v492, 0.5
        %v551 = vmul.f32 %v494, 0.5
        %v552 = vmul.f32 %v498, 0.5
        %v553 = vmul.f32 %v500, 0.5
        %v554 = vmul.f32 %v502, 0.5
        %v555 = vmul.f32 %v504, 0.5
        %v556 = vmul.f32 %v508, 0.5
        %v557 = vmul.f32 %v510, 0.5
        %v558 = vmul.f32 %v512, 0.5
        %v559 = vmul.f32 %v514, 0.5
        %v560 = vmul.f32 %v518, 0.5
        %v561 = vmul.f32 %v520, 0.5
        %v562 = vmul.f32 %v522, 0.5
        %v563 = vmul.f32 %v524, 0.5
        %v564 = vmul.f32 %v528, 0.5
        %v565 = vmul.f32 %v530, 0.5
        %v566 = vmul.f32 %v532, 0.5
        %v567 = vmul.f32 %v534, 0.5
        %v568 = vmul.f32 %v458, 0.044715
        %v569 = vmul.f32 %v460, 0.044715
        %v570 = vmul.f32 %v462, 0.044715
        %v571 = vmul.f32 %v464, 0.044715
        %v572 = vmul.f32 %v468, 0.044715
        %v573 = vmul.f32 %v470, 0.044715
        %v574 = vmul.f32 %v472, 0.044715
        %v575 = vmul.f32 %v474, 0.044715
        %v576 = vmul.f32 %v478, 0.044715
        %v577 = vmul.f32 %v480, 0.044715
        %v578 = vmul.f32 %v482, 0.044715
        %v579 = vmul.f32 %v484, 0.044715
        %v580 = vmul.f32 %v488, 0.044715
        %v581 = vmul.f32 %v490, 0.044715
        %v582 = vmul.f32 %v492, 0.044715
        %v583 = vmul.f32 %v494, 0.044715
        %v584 = vmul.f32 %v498, 0.044715
        %v585 = vmul.f32 %v500, 0.044715
        %v586 = vmul.f32 %v502, 0.044715
        %v587 = vmul.f32 %v504, 0.044715
        %v588 = vmul.f32 %v508, 0.044715
        %v589 = vmul.f32 %v510, 0.044715
        %v590 = vmul.f32 %v512, 0.044715
        %v591 = vmul.f32 %v514, 0.044715
        %v592 = vmul.f32 %v518, 0.044715
        %v593 = vmul.f32 %v520, 0.044715
        %v594 = vmul.f32 %v522, 0.044715
        %v595 = vmul.f32 %v524, 0.044715
        %v596 = vmul.f32 %v528, 0.044715
        %v597 = vmul.f32 %v530, 0.044715
        %v598 = vmul.f32 %v532, 0.044715
        %v599 = vmul.f32 %v534, 0.044715
        %v600 = vmul.f32 %v568, %v458
        %v601 = vmul.f32 %v569, %v460
        %v602 = vmul.f32 %v570, %v462
        %v603 = vmul.f32 %v571, %v464
        %v604 = vmul.f32 %v572, %v468
        %v605 = vmul.f32 %v573, %v470
        %v606 = vmul.f32 %v574, %v472
        %v607 = vmul.f32 %v575, %v474
        %v608 = vmul.f32 %v576, %v478
        %v609 = vmul.f32 %v577, %v480
        %v610 = vmul.f32 %v578, %v482
        %v611 = vmul.f32 %v579, %v484
        %v612 = vmul.f32 %v580, %v488
        %v613 = vmul.f32 %v581, %v490
        %v614 = vmul.f32 %v582, %v492
        %v615 = vmul.f32 %v583, %v494
        %v616 = vmul.f32 %v584, %v498
        %v617 = vmul.f32 %v585, %v500
        %v618 = vmul.f32 %v586, %v502
        %v619 = vmul.f32 %v587, %v504
        %v620 = vmul.f32 %v588, %v508
        %v621 = vmul.f32 %v589, %v510
        %v622 = vmul.f32 %v590, %v512
        %v623 = vmul.f32 %v591, %v514
        %v624 = vmul.f32 %v592, %v518
        %v625 = vmul.f32 %v593, %v520
        %v626 = vmul.f32 %v594, %v522
        %v627 = vmul.f32 %v595, %v524
        %v628 = vmul.f32 %v596, %v528
        %v629 = vmul.f32 %v597, %v530
        %v630 = vmul.f32 %v598, %v532
        %v631 = vmul.f32 %v599, %v534
        %v632 = vmul.f32 %v600, %v458
        %v633 = vmul.f32 %v601, %v460
        %v634 = vmul.f32 %v602, %v462
        %v635 = vmul.f32 %v603, %v464
        %v636 = vmul.f32 %v604, %v468
        %v637 = vmul.f32 %v605, %v470
        %v638 = vmul.f32 %v606, %v472
        %v639 = vmul.f32 %v607, %v474
        %v640 = vmul.f32 %v608, %v478
        %v641 = vmul.f32 %v609, %v480
        %v642 = vmul.f32 %v610, %v482
        %v643 = vmul.f32 %v611, %v484
        %v644 = vmul.f32 %v612, %v488
        %v645 = vmul.f32 %v613, %v490
        %v646 = vmul.f32 %v614, %v492
        %v647 = vmul.f32 %v615, %v494
        %v648 = vmul.f32 %v616, %v498
        %v649 = vmul.f32 %v617, %v500
        %v650 = vmul.f32 %v618, %v502
        %v651 = vmul.f32 %v619, %v504
        %v652 = vmul.f32 %v620, %v508
        %v653 = vmul.f32 %v621, %v510
        %v654 = vmul.f32 %v622, %v512
        %v655 = vmul.f32 %v623, %v514
        %v656 = vmul.f32 %v624, %v518
        %v657 = vmul.f32 %v625, %v520
        %v658 = vmul.f32 %v626, %v522
        %v659 = vmul.f32 %v627, %v524
        %v660 = vmul.f32 %v628, %v528
        %v661 = vmul.f32 %v629, %v530
        %v662 = vmul.f32 %v630, %v532
        %v663 = vmul.f32 %v631, %v534
        %v664 = vadd.f32 %v458, %v632
        %v665 = vadd.f32 %v460, %v633
        %v666 = vadd.f32 %v462, %v634
        %v667 = vadd.f32 %v464, %v635
        %v668 = vadd.f32 %v468, %v636
        %v669 = vadd.f32 %v470, %v637
        %v670 = vadd.f32 %v472, %v638
        %v671 = vadd.f32 %v474, %v639
        %v672 = vadd.f32 %v478, %v640
        %v673 = vadd.f32 %v480, %v641
        %v674 = vadd.f32 %v482, %v642
        %v675 = vadd.f32 %v484, %v643
        %v676 = vadd.f32 %v488, %v644
        %v677 = vadd.f32 %v490, %v645
        %v678 = vadd.f32 %v492, %v646
        %v679 = vadd.f32 %v494, %v647
        %v680 = vadd.f32 %v498, %v648
        %v681 = vadd.f32 %v500, %v649
        %v682 = vadd.f32 %v502, %v650
        %v683 = vadd.f32 %v504, %v651
        %v684 = vadd.f32 %v508, %v652
        %v685 = vadd.f32 %v510, %v653
        %v686 = vadd.f32 %v512, %v654
        %v687 = vadd.f32 %v514, %v655
        %v688 = vadd.f32 %v518, %v656
        %v689 = vadd.f32 %v520, %v657
        %v690 = vadd.f32 %v522, %v658
        %v691 = vadd.f32 %v524, %v659
        %v692 = vadd.f32 %v528, %v660
        %v693 = vadd.f32 %v530, %v661
        %v694 = vadd.f32 %v532, %v662
        %v695 = vadd.f32 %v534, %v663
        %v696 = vmul.f32 %v664, 0.7978846
        %v697 = vmul.f32 %v665, 0.7978846
        %v698 = vmul.f32 %v666, 0.7978846
        %v699 = vmul.f32 %v667, 0.7978846
        %v700 = vmul.f32 %v668, 0.7978846
        %v701 = vmul.f32 %v669, 0.7978846
        %v702 = vmul.f32 %v670, 0.7978846
        %v703 = vmul.f32 %v671, 0.7978846
        %v704 = vmul.f32 %v672, 0.7978846
        %v705 = vmul.f32 %v673, 0.7978846
        %v706 = vmul.f32 %v674, 0.7978846
        %v707 = vmul.f32 %v675, 0.7978846
        %v708 = vmul.f32 %v676, 0.7978846
        %v709 = vmul.f32 %v677, 0.7978846
        %v710 = vmul.f32 %v678, 0.7978846
        %v711 = vmul.f32 %v679, 0.7978846
        %v712 = vmul.f32 %v680, 0.7978846
        %v713 = vmul.f32 %v681, 0.7978846
        %v714 = vmul.f32 %v682, 0.7978846
        %v715 = vmul.f32 %v683, 0.7978846
        %v716 = vmul.f32 %v684, 0.7978846
        %v717 = vmul.f32 %v685, 0.7978846
        %v718 = vmul.f32 %v686, 0.7978846
        %v719 = vmul.f32 %v687, 0.7978846
        %v720 = vmul.f32 %v688, 0.7978846
        %v721 = vmul.f32 %v689, 0.7978846
        %v722 = vmul.f32 %v690, 0.7978846
        %v723 = vmul.f32 %v691, 0.7978846
        %v724 = vmul.f32 %v692, 0.7978846
        %v725 = vmul.f32 %v693, 0.7978846
        %v726 = vmul.f32 %v694, 0.7978846
        %v727 = vmul.f32 %v695, 0.7978846
        %v728 = vtanh.pop %v696
        %v729 = vtanh.pop %v697
        %v730 = vtanh.pop %v698
        %v731 = vtanh.pop %v699
        %v732 = vtanh.pop %v700
        %v733 = vtanh.pop %v701
        %v734 = vtanh.pop %v702
        %v735 = vtanh.pop %v703
        %v736 = vtanh.pop %v704
        %v737 = vtanh.pop %v705
        %v738 = vtanh.pop %v706
        %v739 = vtanh.pop %v707
        %v740 = vtanh.pop %v708
        %v741 = vtanh.pop %v709
        %v742 = vtanh.pop %v710
        %v743 = vtanh.pop %v711
        %v744 = vtanh.pop %v712
        %v745 = vtanh.pop %v713
        %v746 = vtanh.pop %v714
        %v747 = vtanh.pop %v715
        %v748 = vtanh.pop %v716
        %v749 = vtanh.pop %v717
        %v750 = vtanh.pop %v718
        %v751 = vtanh.pop %v719
        %v752 = vtanh.pop %v720
        %v753 = vtanh.pop %v721
        %v754 = vtanh.pop %v722
        %v755 = vtanh.pop %v723
        %v756 = vtanh.pop %v724
        %v757 = vtanh.pop %v725
        %v758 = vtanh.pop %v726
        %v759 = vtanh.pop %v727
        %v760 = vadd.f32 %v728, 1.0
        %v761 = vadd.f32 %v729, 1.0
        %v762 = vadd.f32 %v730, 1.0
        %v763 = vadd.f32 %v731, 1.0
        %v764 = vadd.f32 %v732, 1.0
        %v765 = vadd.f32 %v733, 1.0
        %v766 = vadd.f32 %v734, 1.0
        %v767 = vadd.f32 %v735, 1.0
        %v768 = vadd.f32 %v736, 1.0
        %v769 = vadd.f32 %v737, 1.0
        %v770 = vadd.f32 %v738, 1.0
        %v771 = vadd.f32 %v739, 1.0
        %v772 = vadd.f32 %v740, 1.0
        %v773 = vadd.f32 %v741, 1.0
        %v774 = vadd.f32 %v742, 1.0
        %v775 = vadd.f32 %v743, 1.0
        %v776 = vadd.f32 %v744, 1.0
        %v777 = vadd.f32 %v745, 1.0
        %v778 = vadd.f32 %v746, 1.0
        %v779 = vadd.f32 %v747, 1.0
        %v780 = vadd.f32 %v748, 1.0
        %v781 = vadd.f32 %v749, 1.0
        %v782 = vadd.f32 %v750, 1.0
        %v783 = vadd.f32 %v751, 1.0
        %v784 = vadd.f32 %v752, 1.0
        %v785 = vadd.f32 %v753, 1.0
        %v786 = vadd.f32 %v754, 1.0
        %v787 = vadd.f32 %v755, 1.0
        %v788 = vadd.f32 %v756, 1.0
        %v789 = vadd.f32 %v757, 1.0
        %v790 = vadd.f32 %v758, 1.0
        %v791 = vadd.f32 %v759, 1.0
        %v792 = vmul.f32 %v536, %v760
        %v793 = vmul.f32 %v537, %v761
        %v794 = vmul.f32 %v538, %v762
        %v795 = vmul.f32 %v539, %v763
        %v796 = vmul.f32 %v540, %v764
        %v797 = vmul.f32 %v541, %v765
        %v798 = vmul.f32 %v542, %v766
        %v799 = vmul.f32 %v543, %v767
        %v800 = vmul.f32 %v544, %v768
        %v801 = vmul.f32 %v545, %v769
        %v802 = vmul.f32 %v546, %v770
        %v803 = vmul.f32 %v547, %v771
        %v804 = vmul.f32 %v548, %v772
        %v805 = vmul.f32 %v549, %v773
        %v806 = vmul.f32 %v550, %v774
        %v807 = vmul.f32 %v551, %v775
        %v808 = vmul.f32 %v552, %v776
        %v809 = vmul.f32 %v553, %v777
        %v810 = vmul.f32 %v554, %v778
        %v811 = vmul.f32 %v555, %v779
        %v812 = vmul.f32 %v556, %v780
        %v813 = vmul.f32 %v557, %v781
        %v814 = vmul.f32 %v558, %v782
        %v815 = vmul.f32 %v559, %v783
        %v816 = vmul.f32 %v560, %v784
        %v817 = vmul.f32 %v561, %v785
        %v818 = vmul.f32 %v562, %v786
        %v819 = vmul.f32 %v563, %v787
        %v820 = vmul.f32 %v564, %v788
        %v821 = vmul.f32 %v565, %v789
        %v822 = vmul.f32 %v566, %v790
        %v823 = vmul.f32 %v567, %v791
        %v824 = vpack.c.bf16 %v794, %v792
        %v825 = vpack.c.bf16 %v795, %v793
        %v826 = vpack.c.bf16 %v798, %v796
        %v827 = vpack.c.bf16 %v799, %v797
        %v828 = vpack.c.bf16 %v802, %v800
        %v829 = vpack.c.bf16 %v803, %v801
        %v830 = vpack.c.bf16 %v806, %v804
        %v831 = vpack.c.bf16 %v807, %v805
        %v832 = vpack.c.bf16 %v810, %v808
        %v833 = vpack.c.bf16 %v811, %v809
        %v834 = vpack.c.bf16 %v814, %v812
        %v835 = vpack.c.bf16 %v815, %v813
        %v836 = vpack.c.bf16 %v818, %v816
        %v837 = vpack.c.bf16 %v819, %v817
        %v838 = vpack.c.bf16 %v822, %v820
        %v839 = vpack.c.bf16 %v823, %v821
        %v840 = vld [vmem:[#allocation2] sm:$0xff]
        %v841 = vld [vmem:[#allocation2 + $0x8] sm:$0xff]
        %v842 = vld [vmem:[#allocation2 + $0x10] sm:$0xff]
        %v843 = vld [vmem:[#allocation2 + $0x18] sm:$0xff]
        %v844 = vld [vmem:[#allocation2 + $0x20] sm:$0xff]
        %v845 = vld [vmem:[#allocation2 + $0x28] sm:$0xff]
        %v846 = vld [vmem:[#allocation2 + $0x30] sm:$0xff]
        %v847 = vld [vmem:[#allocation2 + $0x38] sm:$0xff]
        %v848 = vld [vmem:[#allocation2 + $0x40] sm:$0xff]
        %v849 = vld [vmem:[#allocation2 + $0x48] sm:$0xff]
        %v850 = vld [vmem:[#allocation2 + $0x50] sm:$0xff]
        %v851 = vld [vmem:[#allocation2 + $0x58] sm:$0xff]
        %v852 = vld [vmem:[#allocation2 + $0x60] sm:$0xff]
        %v853 = vld [vmem:[#allocation2 + $0x68] sm:$0xff]
        %v854 = vld [vmem:[#allocation2 + $0x70] sm:$0xff]
        %v855 = vld [vmem:[#allocation2 + $0x78] sm:$0xff]
        %v856 = vld [vmem:[#allocation8] sm:$0xf]
        %v857 = vld [vmem:[#allocation8 + $0x4] sm:$0xf]
        %v858 = vld [vmem:[#allocation8 + $0x8] sm:$0xf]
        %v859 = vld [vmem:[#allocation8 + $0xc] sm:$0xf]
        %v860 = vld [vmem:[#allocation8 + $0x10] sm:$0xf]
        %v861 = vld [vmem:[#allocation8 + $0x14] sm:$0xf]
        %v862 = vld [vmem:[#allocation8 + $0x18] sm:$0xf]
        %v863 = vld [vmem:[#allocation8 + $0x1c] sm:$0xf]
        %v864 = vld [vmem:[#allocation8 + $0x20] sm:$0xf]
        %v865 = vld [vmem:[#allocation8 + $0x24] sm:$0xf]
        %v866 = vld [vmem:[#allocation8 + $0x28] sm:$0xf]
        %v867 = vld [vmem:[#allocation8 + $0x2c] sm:$0xf]
        %v868 = vld [vmem:[#allocation8 + $0x30] sm:$0xf]
        %v869 = vld [vmem:[#allocation8 + $0x34] sm:$0xf]
        %v870 = vld [vmem:[#allocation8 + $0x38] sm:$0xf]
        %v871 = vld [vmem:[#allocation8 + $0x3c] sm:$0xf]
        %v872 = vld [vmem:[#allocation8 + $0x40] sm:$0xf]
        %v873 = vld [vmem:[#allocation8 + $0x44] sm:$0xf]
        %v874 = vld [vmem:[#allocation8 + $0x48] sm:$0xf]
        %v875 = vld [vmem:[#allocation8 + $0x4c] sm:$0xf]
        %v876 = vld [vmem:[#allocation8 + $0x50] sm:$0xf]
        %v877 = vld [vmem:[#allocation8 + $0x54] sm:$0xf]
        %v878 = vld [vmem:[#allocation8 + $0x58] sm:$0xf]
        %v879 = vld [vmem:[#allocation8 + $0x5c] sm:$0xf]
        %v880 = vld [vmem:[#allocation8 + $0x60] sm:$0xf]
        %v881 = vld [vmem:[#allocation8 + $0x64] sm:$0xf]
        %v882 = vld [vmem:[#allocation8 + $0x68] sm:$0xf]
        %v883 = vld [vmem:[#allocation8 + $0x6c] sm:$0xf]
        %v884 = vld [vmem:[#allocation8 + $0x70] sm:$0xf]
        %v885 = vld [vmem:[#allocation8 + $0x74] sm:$0xf]
        %v886 = vld [vmem:[#allocation8 + $0x78] sm:$0xf]
        %v887 = vld [vmem:[#allocation8 + $0x7c] sm:$0xf]
        %v920 = vunpack.c.l.b16 %v856
        %v921 = vunpack.c.l.b16 %v857
        %v922 = vunpack.c.l.b16 %v858
        %v923 = vunpack.c.l.b16 %v859
        %v924 = vunpack.c.l.b16 %v860
        %v925 = vunpack.c.l.b16 %v861
        %v926 = vunpack.c.l.b16 %v862
        %v927 = vunpack.c.l.b16 %v863
        %v928 = vunpack.c.l.b16 %v864
        %v929 = vunpack.c.l.b16 %v865
        %v930 = vunpack.c.l.b16 %v866
        %v931 = vunpack.c.l.b16 %v867
        %v932 = vunpack.c.l.b16 %v868
        %v933 = vunpack.c.l.b16 %v869
        %v934 = vunpack.c.l.b16 %v870
        %v935 = vunpack.c.l.b16 %v871
        %v936 = vunpack.c.l.b16 %v872
        %v937 = vunpack.c.l.b16 %v873
        %v938 = vunpack.c.l.b16 %v874
        %v939 = vunpack.c.l.b16 %v875
        %v940 = vunpack.c.l.b16 %v876
        %v941 = vunpack.c.l.b16 %v877
        %v942 = vunpack.c.l.b16 %v878
        %v943 = vunpack.c.l.b16 %v879
        %v944 = vunpack.c.l.b16 %v880
        %v945 = vunpack.c.l.b16 %v881
        %v946 = vunpack.c.l.b16 %v882
        %v947 = vunpack.c.l.b16 %v883
        %v948 = vunpack.c.l.b16 %v884
        %v949 = vunpack.c.l.b16 %v885
        %v950 = vunpack.c.l.b16 %v886
        %v951 = vunpack.c.l.b16 %v887
        %v952 = vpack.c.b16 %v921, %v920
        %v953 = vpack.c.b16 %v923, %v922
        %v954 = vpack.c.b16 %v925, %v924
        %v955 = vpack.c.b16 %v927, %v926
        %v956 = vpack.c.b16 %v929, %v928
        %v957 = vpack.c.b16 %v931, %v930
        %v958 = vpack.c.b16 %v933, %v932
        %v959 = vpack.c.b16 %v935, %v934
        %v960 = vpack.c.b16 %v937, %v936
        %v961 = vpack.c.b16 %v939, %v938
        %v962 = vpack.c.b16 %v941, %v940
        %v963 = vpack.c.b16 %v943, %v942
        %v964 = vpack.c.b16 %v945, %v944
        %v965 = vpack.c.b16 %v947, %v946
        %v966 = vpack.c.b16 %v949, %v948
        %v967 = vpack.c.b16 %v951, %v950
        %984 = vmatprep.subr.bf16.mxu0 0
        %985 = vmatpush1.bf16.msra.mxu0 %v952
        %986 = vmatprep.subr.bf16.mxu0 0
        %987 = vmatpush1.bf16.msra.mxu0 %v953
        %988 = vmatprep.subr.bf16.mxu0 0
        %989 = vmatpush1.bf16.msra.mxu0 %v954
        %990 = vmatprep.subr.bf16.mxu0 0
        %991 = vmatpush1.bf16.msra.mxu0 %v955
        %992 = vmatprep.subr.bf16.mxu0 0
        %993 = vmatpush1.bf16.msra.mxu0 %v956
        %994 = vmatprep.subr.bf16.mxu0 0
        %995 = vmatpush1.bf16.msra.mxu0 %v957
        %996 = vmatprep.subr.bf16.mxu0 0
        %997 = vmatpush1.bf16.msra.mxu0 %v958
        %998 = vmatprep.subr.bf16.mxu0 0
        %999 = vmatpush1.bf16.msra.mxu0 %v959
        %1000 = vmatprep.subr.bf16.mxu0 0
        %1001 = vmatpush1.bf16.msra.mxu0 %v960
        %1002 = vmatprep.subr.bf16.mxu0 0
        %1003 = vmatpush1.bf16.msra.mxu0 %v961
        %1004 = vmatprep.subr.bf16.mxu0 0
        %1005 = vmatpush1.bf16.msra.mxu0 %v962
        %1006 = vmatprep.subr.bf16.mxu0 0
        %1007 = vmatpush1.bf16.msra.mxu0 %v963
        %1008 = vmatprep.subr.bf16.mxu0 0
        %1009 = vmatpush1.bf16.msra.mxu0 %v964
        %1010 = vmatprep.subr.bf16.mxu0 0
        %1011 = vmatpush1.bf16.msra.mxu0 %v965
        %1012 = vmatprep.subr.bf16.mxu0 0
        %1013 = vmatpush1.bf16.msra.mxu0 %v966
        %1014 = vmatprep.subr.bf16.mxu0 0
        %1015 = vmatpush1.bf16.msra.mxu0 %v967
        %1016 = vmatprep.mubr.bf16.mxu0 %v825
        %1017 = vmatmul.mubr.bf16.gmra.mrb[0].mxu0 %v824
        %v1018 = vpop.f32.mrb[0].mxu0
        %v1019 = vadd.f32 0.0, %v1018
        %v1020 = vpop.f32.mrb[0].mxu0
        %v1021 = vpop.f32.mrb[0].mxu0
        %v1022 = vadd.f32 0.0, %v1021
        %v1023 = vpop.f32.mrb[0].mxu0
        %1024 = vmatprep.mubr.bf16.mxu0 %v827
        %1025 = vmatmul.mubr.bf16.gmra.mrb[0].mxu0 %v826
        %v1026 = vpop.f32.mrb[0].mxu0
        %v1027 = vadd.f32 0.0, %v1026
        %v1028 = vpop.f32.mrb[0].mxu0
        %v1029 = vpop.f32.mrb[0].mxu0
        %v1030 = vadd.f32 0.0, %v1029
        %v1031 = vpop.f32.mrb[0].mxu0
        %1032 = vmatprep.mubr.bf16.mxu0 %v829
        %1033 = vmatmul.mubr.bf16.gmra.mrb[0].mxu0 %v828
        %v1034 = vpop.f32.mrb[0].mxu0
        %v1035 = vadd.f32 0.0, %v1034
        %v1036 = vpop.f32.mrb[0].mxu0
        %v1037 = vpop.f32.mrb[0].mxu0
        %v1038 = vadd.f32 0.0, %v1037
        %v1039 = vpop.f32.mrb[0].mxu0
        %1040 = vmatprep.mubr.bf16.mxu0 %v831
        %1041 = vmatmul.mubr.bf16.gmra.mrb[0].mxu0 %v830
        %v1042 = vpop.f32.mrb[0].mxu0
        %v1043 = vadd.f32 0.0, %v1042
        %v1044 = vpop.f32.mrb[0].mxu0
        %v1045 = vpop.f32.mrb[0].mxu0
        %v1046 = vadd.f32 0.0, %v1045
        %v1047 = vpop.f32.mrb[0].mxu0
        %1048 = vmatprep.mubr.bf16.mxu0 %v833
        %1049 = vmatmul.mubr.bf16.gmra.mrb[0].mxu0 %v832
        %v1050 = vpop.f32.mrb[0].mxu0
        %v1051 = vadd.f32 0.0, %v1050
        %v1052 = vpop.f32.mrb[0].mxu0
        %v1053 = vpop.f32.mrb[0].mxu0
        %v1054 = vadd.f32 0.0, %v1053
        %v1055 = vpop.f32.mrb[0].mxu0
        %1056 = vmatprep.mubr.bf16.mxu0 %v835
        %1057 = vmatmul.mubr.bf16.gmra.mrb[0].mxu0 %v834
        %v1058 = vpop.f32.mrb[0].mxu0
        %v1059 = vadd.f32 0.0, %v1058
        %v1060 = vpop.f32.mrb[0].mxu0
        %v1061 = vpop.f32.mrb[0].mxu0
        %v1062 = vadd.f32 0.0, %v1061
        %v1063 = vpop.f32.mrb[0].mxu0
        %1064 = vmatprep.mubr.bf16.mxu0 %v837
        %1065 = vmatmul.mubr.bf16.gmra.mrb[0].mxu0 %v836
        %v1066 = vpop.f32.mrb[0].mxu0
        %v1067 = vadd.f32 0.0, %v1066
        %v1068 = vpop.f32.mrb[0].mxu0
        %v1069 = vpop.f32.mrb[0].mxu0
        %v1070 = vadd.f32 0.0, %v1069
        %v1071 = vpop.f32.mrb[0].mxu0
        %1072 = vmatprep.mubr.bf16.mxu0 %v839
        %1073 = vmatmul.mubr.bf16.gmra.mrb[0].mxu0 %v838
        %v1074 = vpop.f32.mrb[0].mxu0
        %v1075 = vadd.f32 0.0, %v1074
        %v1076 = vpop.f32.mrb[0].mxu0
        %v1077 = vpop.f32.mrb[0].mxu0
        %v1078 = vadd.f32 0.0, %v1077
        %v1079 = vpop.f32.mrb[0].mxu0
        %1080 = vdwg.mxu0
        %v1081 = vadd.f32 %v840, %v1019
        %v1082 = vadd.f32 %v841, %v1022
        %v1083 = vadd.f32 %v842, %v1027
        %v1084 = vadd.f32 %v843, %v1030
        %v1085 = vadd.f32 %v844, %v1035
        %v1086 = vadd.f32 %v845, %v1038
        %v1087 = vadd.f32 %v846, %v1043
        %v1088 = vadd.f32 %v847, %v1046
        %v1089 = vadd.f32 %v848, %v1051
        %v1090 = vadd.f32 %v849, %v1054
        %v1091 = vadd.f32 %v850, %v1059
        %v1092 = vadd.f32 %v851, %v1062
        %v1093 = vadd.f32 %v852, %v1067
        %v1094 = vadd.f32 %v853, %v1070
        %v1095 = vadd.f32 %v854, %v1075
        %v1096 = vadd.f32 %v855, %v1078
        %1097 = vst [vmem:[#allocation2] sm:$0xff] %v1081
        %1098 = vst [vmem:[#allocation2 + $0x8] sm:$0xff] %v1082
        %1099 = vst [vmem:[#allocation2 + $0x10] sm:$0xff] %v1083
        %1100 = vst [vmem:[#allocation2 + $0x18] sm:$0xff] %v1084
        %1101 = vst [vmem:[#allocation2 + $0x20] sm:$0xff] %v1085
        %1102 = vst [vmem:[#allocation2 + $0x28] sm:$0xff] %v1086
        %1103 = vst [vmem:[#allocation2 + $0x30] sm:$0xff] %v1087
        %1104 = vst [vmem:[#allocation2 + $0x38] sm:$0xff] %v1088
        %1105 = vst [vmem:[#allocation2 + $0x40] sm:$0xff] %v1089
        %1106 = vst [vmem:[#allocation2 + $0x48] sm:$0xff] %v1090
        %1107 = vst [vmem:[#allocation2 + $0x50] sm:$0xff] %v1091
        %1108 = vst [vmem:[#allocation2 + $0x58] sm:$0xff] %v1092
        %1109 = vst [vmem:[#allocation2 + $0x60] sm:$0xff] %v1093
        %1110 = vst [vmem:[#allocation2 + $0x68] sm:$0xff] %v1094
        %1111 = vst [vmem:[#allocation2 + $0x70] sm:$0xff] %v1095
        %1112 = vst [vmem:[#allocation2 + $0x78] sm:$0xff] %v1096
        %s1113 = scalar_lea.vmem [#allocation6], 8
        %v1114 = vld [vmem:[%s1113] sm:$0xff]
        %v1115 = vld [vmem:[%s1113 + $0x10] sm:$0xff]
        %v1116 = vld [vmem:[%s1113 + $0x20] sm:$0xff]
        %v1117 = vld [vmem:[%s1113 + $0x30] sm:$0xff]
        %v1118 = vld [vmem:[%s1113 + $0x40] sm:$0xff]
        %v1119 = vld [vmem:[%s1113 + $0x50] sm:$0xff]
        %v1120 = vld [vmem:[%s1113 + $0x60] sm:$0xff]
        %v1121 = vld [vmem:[%s1113 + $0x70] sm:$0xff]
        %v1122 = vld [vmem:[%s1113 + $0x80] sm:$0xff]
        %v1123 = vld [vmem:[%s1113 + $0x90] sm:$0xff]
        %v1124 = vld [vmem:[%s1113 + $0xa0] sm:$0xff]
        %v1125 = vld [vmem:[%s1113 + $0xb0] sm:$0xff]
        %v1126 = vld [vmem:[%s1113 + $0xc0] sm:$0xff]
        %v1127 = vld [vmem:[%s1113 + $0xd0] sm:$0xff]
        %v1128 = vld [vmem:[%s1113 + $0xe0] sm:$0xff]
        %v1129 = vld [vmem:[%s1113 + $0xf0] sm:$0xff]
        %s1130 = scalar_lea.vmem %s2, 2
        %v1131 = vld [vmem:[%s1130] sm:$0x3]
        %v1133 = vlaneseq
        %v1134 = vshrl.u32 %v1133, 7
        %v1135 = vsub.s32 0, %v1134
        %v1136 = vrot.slane %v1131, %v1135
        %v1137 = vlaneseq
        %v1138 = vshrl.u32 %v1137, 7
        %v1139 = vsub.s32 1, %v1138
        %v1140 = vrot.slane %v1131, %v1139
        %v1159 = vunpack.c.l.b16 %v1114
        %v1160 = vunpack.c.h.b16 %v1114
        %v1161 = vunpack.c.l.b16 %v1115
        %v1162 = vunpack.c.h.b16 %v1115
        %v1163 = vunpack.c.l.b16 %v1116
        %v1164 = vunpack.c.h.b16 %v1116
        %v1165 = vunpack.c.l.b16 %v1117
        %v1166 = vunpack.c.h.b16 %v1117
        %v1167 = vunpack.c.l.b16 %v1118
        %v1168 = vunpack.c.h.b16 %v1118
        %v1169 = vunpack.c.l.b16 %v1119
        %v1170 = vunpack.c.h.b16 %v1119
        %v1171 = vunpack.c.l.b16 %v1120
        %v1172 = vunpack.c.h.b16 %v1120
        %v1173 = vunpack.c.l.b16 %v1121
        %v1174 = vunpack.c.h.b16 %v1121
        %v1175 = vunpack.c.l.b16 %v1122
        %v1176 = vunpack.c.h.b16 %v1122
        %v1177 = vunpack.c.l.b16 %v1123
        %v1178 = vunpack.c.h.b16 %v1123
        %v1179 = vunpack.c.l.b16 %v1124
        %v1180 = vunpack.c.h.b16 %v1124
        %v1181 = vunpack.c.l.b16 %v1125
        %v1182 = vunpack.c.h.b16 %v1125
        %v1183 = vunpack.c.l.b16 %v1126
        %v1184 = vunpack.c.h.b16 %v1126
        %v1185 = vunpack.c.l.b16 %v1127
        %v1186 = vunpack.c.h.b16 %v1127
        %v1187 = vunpack.c.l.b16 %v1128
        %v1188 = vunpack.c.h.b16 %v1128
        %v1189 = vunpack.c.l.b16 %v1129
        %v1190 = vunpack.c.h.b16 %v1129
        %v1191 = vpack.c.b16 %v1161, %v1159
        %v1192 = vpack.c.b16 %v1162, %v1160
        %v1193 = vpack.c.b16 %v1165, %v1163
        %v1194 = vpack.c.b16 %v1166, %v1164
        %v1195 = vpack.c.b16 %v1169, %v1167
        %v1196 = vpack.c.b16 %v1170, %v1168
        %v1197 = vpack.c.b16 %v1173, %v1171
        %v1198 = vpack.c.b16 %v1174, %v1172
        %v1199 = vpack.c.b16 %v1177, %v1175
        %v1200 = vpack.c.b16 %v1178, %v1176
        %v1201 = vpack.c.b16 %v1181, %v1179
        %v1202 = vpack.c.b16 %v1182, %v1180
        %v1203 = vpack.c.b16 %v1185, %v1183
        %v1204 = vpack.c.b16 %v1186, %v1184
        %v1205 = vpack.c.b16 %v1189, %v1187
        %v1206 = vpack.c.b16 %v1190, %v1188
        %1223 = vmatprep.subr.bf16.mxu0 %v1192
        %1224 = vmatpush1.bf16.msra.mxu0 %v1191
        %1225 = vmatprep.subr.bf16.mxu0 %v1194
        %1226 = vmatpush1.bf16.msra.mxu0 %v1193
        %1227 = vmatprep.subr.bf16.mxu0 %v1196
        %1228 = vmatpush1.bf16.msra.mxu0 %v1195
        %1229 = vmatprep.subr.bf16.mxu0 %v1198
        %1230 = vmatpush1.bf16.msra.mxu0 %v1197
        %1231 = vmatprep.subr.bf16.mxu0 %v1200
        %1232 = vmatpush1.bf16.msra.mxu0 %v1199
        %1233 = vmatprep.subr.bf16.mxu0 %v1202
        %1234 = vmatpush1.bf16.msra.mxu0 %v1201
        %1235 = vmatprep.subr.bf16.mxu0 %v1204
        %1236 = vmatpush1.bf16.msra.mxu0 %v1203
        %1237 = vmatprep.subr.bf16.mxu0 %v1206
        %1238 = vmatpush1.bf16.msra.mxu0 %v1205
        %1239 = vmatprep.subr.bf16.mxu0 0
        %1240 = vmatpush1.bf16.msra.mxu0 0
        %1241 = vmatprep.subr.bf16.mxu0 0
        %1242 = vmatpush1.bf16.msra.mxu0 0
        %1243 = vmatprep.subr.bf16.mxu0 0
        %1244 = vmatpush1.bf16.msra.mxu0 0
        %1245 = vmatprep.subr.bf16.mxu0 0
        %1246 = vmatpush1.bf16.msra.mxu0 0
        %1247 = vmatprep.subr.bf16.mxu0 0
        %1248 = vmatpush1.bf16.msra.mxu0 0
        %1249 = vmatprep.subr.bf16.mxu0 0
        %1250 = vmatpush1.bf16.msra.mxu0 0
        %1251 = vmatprep.subr.bf16.mxu0 0
        %1252 = vmatpush1.bf16.msra.mxu0 0
        %1253 = vmatprep.subr.bf16.mxu0 0
        %1254 = vmatpush1.bf16.msra.mxu0 0
        %1255 = vmatprep.mubr.bf16.mxu0 0
        %1256 = vmatmul.mubr.bf16.gmra.mrb[0].mxu0 %v291
        %v1257 = vpop.f32.mrb[0].mxu0
        %v1258 = vadd.f32 %v1136, %v1257
        %v1259 = vpop.f32.mrb[0].mxu0
        %v1260 = vadd.f32 %v1140, %v1259
        %v1261 = vpop.f32.mrb[0].mxu0
        %v1262 = vadd.f32 %v1136, %v1261
        %v1263 = vpop.f32.mrb[0].mxu0
        %v1264 = vadd.f32 %v1140, %v1263
        %1265 = vmatprep.mubr.bf16.mxu0 0
        %1266 = vmatmul.mubr.bf16.gmra.mrb[0].mxu0 %v292
        %v1267 = vpop.f32.mrb[0].mxu0
        %v1268 = vadd.f32 %v1136, %v1267
        %v1269 = vpop.f32.mrb[0].mxu0
        %v1270 = vadd.f32 %v1140, %v1269
        %v1271 = vpop.f32.mrb[0].mxu0
        %v1272 = vadd.f32 %v1136, %v1271
        %v1273 = vpop.f32.mrb[0].mxu0
        %v1274 = vadd.f32 %v1140, %v1273
        %1275 = vmatprep.mubr.bf16.mxu0 0
        %1276 = vmatmul.mubr.bf16.gmra.mrb[0].mxu0 %v293
        %v1277 = vpop.f32.mrb[0].mxu0
        %v1278 = vadd.f32 %v1136, %v1277
        %v1279 = vpop.f32.mrb[0].mxu0
        %v1280 = vadd.f32 %v1140, %v1279
        %v1281 = vpop.f32.mrb[0].mxu0
        %v1282 = vadd.f32 %v1136, %v1281
        %v1283 = vpop.f32.mrb[0].mxu0
        %v1284 = vadd.f32 %v1140, %v1283
        %1285 = vmatprep.mubr.bf16.mxu0 0
        %1286 = vmatmul.mubr.bf16.gmra.mrb[0].mxu0 %v294
        %v1287 = vpop.f32.mrb[0].mxu0
        %v1288 = vadd.f32 %v1136, %v1287
        %v1289 = vpop.f32.mrb[0].mxu0
        %v1290 = vadd.f32 %v1140, %v1289
        %v1291 = vpop.f32.mrb[0].mxu0
        %v1292 = vadd.f32 %v1136, %v1291
        %v1293 = vpop.f32.mrb[0].mxu0
        %v1294 = vadd.f32 %v1140, %v1293
        %1295 = vmatprep.mubr.bf16.mxu0 0
        %1296 = vmatmul.mubr.bf16.gmra.mrb[0].mxu0 %v295
        %v1297 = vpop.f32.mrb[0].mxu0
        %v1298 = vadd.f32 %v1136, %v1297
        %v1299 = vpop.f32.mrb[0].mxu0
        %v1300 = vadd.f32 %v1140, %v1299
        %v1301 = vpop.f32.mrb[0].mxu0
        %v1302 = vadd.f32 %v1136, %v1301
        %v1303 = vpop.f32.mrb[0].mxu0
        %v1304 = vadd.f32 %v1140, %v1303
        %1305 = vmatprep.mubr.bf16.mxu0 0
        %1306 = vmatmul.mubr.bf16.gmra.mrb[0].mxu0 %v296
        %v1307 = vpop.f32.mrb[0].mxu0
        %v1308 = vadd.f32 %v1136, %v1307
        %v1309 = vpop.f32.mrb[0].mxu0
        %v1310 = vadd.f32 %v1140, %v1309
        %v1311 = vpop.f32.mrb[0].mxu0
        %v1312 = vadd.f32 %v1136, %v1311
        %v1313 = vpop.f32.mrb[0].mxu0
        %v1314 = vadd.f32 %v1140, %v1313
        %1315 = vmatprep.mubr.bf16.mxu0 0
        %1316 = vmatmul.mubr.bf16.gmra.mrb[0].mxu0 %v297
        %v1317 = vpop.f32.mrb[0].mxu0
        %v1318 = vadd.f32 %v1136, %v1317
        %v1319 = vpop.f32.mrb[0].mxu0
        %v1320 = vadd.f32 %v1140, %v1319
        %v1321 = vpop.f32.mrb[0].mxu0
        %v1322 = vadd.f32 %v1136, %v1321
        %v1323 = vpop.f32.mrb[0].mxu0
        %v1324 = vadd.f32 %v1140, %v1323
        %1325 = vmatprep.mubr.bf16.mxu0 0
        %1326 = vmatmul.mubr.bf16.gmra.mrb[0].mxu0 %v298
        %v1327 = vpop.f32.mrb[0].mxu0
        %v1328 = vadd.f32 %v1136, %v1327
        %v1329 = vpop.f32.mrb[0].mxu0
        %v1330 = vadd.f32 %v1140, %v1329
        %v1331 = vpop.f32.mrb[0].mxu0
        %v1332 = vadd.f32 %v1136, %v1331
        %v1333 = vpop.f32.mrb[0].mxu0
        %v1334 = vadd.f32 %v1140, %v1333
        %1335 = vdwg.mxu0
        %v1336 = vmul.f32 %v1258, 0.5
        %v1337 = vmul.f32 %v1260, 0.5
        %v1338 = vmul.f32 %v1262, 0.5
        %v1339 = vmul.f32 %v1264, 0.5
        %v1340 = vmul.f32 %v1268, 0.5
        %v1341 = vmul.f32 %v1270, 0.5
        %v1342 = vmul.f32 %v1272, 0.5
        %v1343 = vmul.f32 %v1274, 0.5
        %v1344 = vmul.f32 %v1278, 0.5
        %v1345 = vmul.f32 %v1280, 0.5
        %v1346 = vmul.f32 %v1282, 0.5
        %v1347 = vmul.f32 %v1284, 0.5
        %v1348 = vmul.f32 %v1288, 0.5
        %v1349 = vmul.f32 %v1290, 0.5
        %v1350 = vmul.f32 %v1292, 0.5
        %v1351 = vmul.f32 %v1294, 0.5
        %v1352 = vmul.f32 %v1298, 0.5
        %v1353 = vmul.f32 %v1300, 0.5
        %v1354 = vmul.f32 %v1302, 0.5
        %v1355 = vmul.f32 %v1304, 0.5
        %v1356 = vmul.f32 %v1308, 0.5
        %v1357 = vmul.f32 %v1310, 0.5
        %v1358 = vmul.f32 %v1312, 0.5
        %v1359 = vmul.f32 %v1314, 0.5
        %v1360 = vmul.f32 %v1318, 0.5
        %v1361 = vmul.f32 %v1320, 0.5
        %v1362 = vmul.f32 %v1322, 0.5
        %v1363 = vmul.f32 %v1324, 0.5
        %v1364 = vmul.f32 %v1328, 0.5
        %v1365 = vmul.f32 %v1330, 0.5
        %v1366 = vmul.f32 %v1332, 0.5
        %v1367 = vmul.f32 %v1334, 0.5
        %v1368 = vmul.f32 %v1258, 0.044715
        %v1369 = vmul.f32 %v1260, 0.044715
        %v1370 = vmul.f32 %v1262, 0.044715
        %v1371 = vmul.f32 %v1264, 0.044715
        %v1372 = vmul.f32 %v1268, 0.044715
        %v1373 = vmul.f32 %v1270, 0.044715
        %v1374 = vmul.f32 %v1272, 0.044715
        %v1375 = vmul.f32 %v1274, 0.044715
        %v1376 = vmul.f32 %v1278, 0.044715
        %v1377 = vmul.f32 %v1280, 0.044715
        %v1378 = vmul.f32 %v1282, 0.044715
        %v1379 = vmul.f32 %v1284, 0.044715
        %v1380 = vmul.f32 %v1288, 0.044715
        %v1381 = vmul.f32 %v1290, 0.044715
        %v1382 = vmul.f32 %v1292, 0.044715
        %v1383 = vmul.f32 %v1294, 0.044715
        %v1384 = vmul.f32 %v1298, 0.044715
        %v1385 = vmul.f32 %v1300, 0.044715
        %v1386 = vmul.f32 %v1302, 0.044715
        %v1387 = vmul.f32 %v1304, 0.044715
        %v1388 = vmul.f32 %v1308, 0.044715
        %v1389 = vmul.f32 %v1310, 0.044715
        %v1390 = vmul.f32 %v1312, 0.044715
        %v1391 = vmul.f32 %v1314, 0.044715
        %v1392 = vmul.f32 %v1318, 0.044715
        %v1393 = vmul.f32 %v1320, 0.044715
        %v1394 = vmul.f32 %v1322, 0.044715
        %v1395 = vmul.f32 %v1324, 0.044715
        %v1396 = vmul.f32 %v1328, 0.044715
        %v1397 = vmul.f32 %v1330, 0.044715
        %v1398 = vmul.f32 %v1332, 0.044715
        %v1399 = vmul.f32 %v1334, 0.044715
        %v1400 = vmul.f32 %v1368, %v1258
        %v1401 = vmul.f32 %v1369, %v1260
        %v1402 = vmul.f32 %v1370, %v1262
        %v1403 = vmul.f32 %v1371, %v1264
        %v1404 = vmul.f32 %v1372, %v1268
        %v1405 = vmul.f32 %v1373, %v1270
        %v1406 = vmul.f32 %v1374, %v1272
        %v1407 = vmul.f32 %v1375, %v1274
        %v1408 = vmul.f32 %v1376, %v1278
        %v1409 = vmul.f32 %v1377, %v1280
        %v1410 = vmul.f32 %v1378, %v1282
        %v1411 = vmul.f32 %v1379, %v1284
        %v1412 = vmul.f32 %v1380, %v1288
        %v1413 = vmul.f32 %v1381, %v1290
        %v1414 = vmul.f32 %v1382, %v1292
        %v1415 = vmul.f32 %v1383, %v1294
        %v1416 = vmul.f32 %v1384, %v1298
        %v1417 = vmul.f32 %v1385, %v1300
        %v1418 = vmul.f32 %v1386, %v1302
        %v1419 = vmul.f32 %v1387, %v1304
        %v1420 = vmul.f32 %v1388, %v1308
        %v1421 = vmul.f32 %v1389, %v1310
        %v1422 = vmul.f32 %v1390, %v1312
        %v1423 = vmul.f32 %v1391, %v1314
        %v1424 = vmul.f32 %v1392, %v1318
        %v1425 = vmul.f32 %v1393, %v1320
        %v1426 = vmul.f32 %v1394, %v1322
        %v1427 = vmul.f32 %v1395, %v1324
        %v1428 = vmul.f32 %v1396, %v1328
        %v1429 = vmul.f32 %v1397, %v1330
        %v1430 = vmul.f32 %v1398, %v1332
        %v1431 = vmul.f32 %v1399, %v1334
        %v1432 = vmul.f32 %v1400, %v1258
        %v1433 = vmul.f32 %v1401, %v1260
        %v1434 = vmul.f32 %v1402, %v1262
        %v1435 = vmul.f32 %v1403, %v1264
        %v1436 = vmul.f32 %v1404, %v1268
        %v1437 = vmul.f32 %v1405, %v1270
        %v1438 = vmul.f32 %v1406, %v1272
        %v1439 = vmul.f32 %v1407, %v1274
        %v1440 = vmul.f32 %v1408, %v1278
        %v1441 = vmul.f32 %v1409, %v1280
        %v1442 = vmul.f32 %v1410, %v1282
        %v1443 = vmul.f32 %v1411, %v1284
        %v1444 = vmul.f32 %v1412, %v1288
        %v1445 = vmul.f32 %v1413, %v1290
        %v1446 = vmul.f32 %v1414, %v1292
        %v1447 = vmul.f32 %v1415, %v1294
        %v1448 = vmul.f32 %v1416, %v1298
        %v1449 = vmul.f32 %v1417, %v1300
        %v1450 = vmul.f32 %v1418, %v1302
        %v1451 = vmul.f32 %v1419, %v1304
        %v1452 = vmul.f32 %v1420, %v1308
        %v1453 = vmul.f32 %v1421, %v1310
        %v1454 = vmul.f32 %v1422, %v1312
        %v1455 = vmul.f32 %v1423, %v1314
        %v1456 = vmul.f32 %v1424, %v1318
        %v1457 = vmul.f32 %v1425, %v1320
        %v1458 = vmul.f32 %v1426, %v1322
        %v1459 = vmul.f32 %v1427, %v1324
        %v1460 = vmul.f32 %v1428, %v1328
        %v1461 = vmul.f32 %v1429, %v1330
        %v1462 = vmul.f32 %v1430, %v1332
        %v1463 = vmul.f32 %v1431, %v1334
        %v1464 = vadd.f32 %v1258, %v1432
        %v1465 = vadd.f32 %v1260, %v1433
        %v1466 = vadd.f32 %v1262, %v1434
        %v1467 = vadd.f32 %v1264, %v1435
        %v1468 = vadd.f32 %v1268, %v1436
        %v1469 = vadd.f32 %v1270, %v1437
        %v1470 = vadd.f32 %v1272, %v1438
        %v1471 = vadd.f32 %v1274, %v1439
        %v1472 = vadd.f32 %v1278, %v1440
        %v1473 = vadd.f32 %v1280, %v1441
        %v1474 = vadd.f32 %v1282, %v1442
        %v1475 = vadd.f32 %v1284, %v1443
        %v1476 = vadd.f32 %v1288, %v1444
        %v1477 = vadd.f32 %v1290, %v1445
        %v1478 = vadd.f32 %v1292, %v1446
        %v1479 = vadd.f32 %v1294, %v1447
        %v1480 = vadd.f32 %v1298, %v1448
        %v1481 = vadd.f32 %v1300, %v1449
        %v1482 = vadd.f32 %v1302, %v1450
        %v1483 = vadd.f32 %v1304, %v1451
        %v1484 = vadd.f32 %v1308, %v1452
        %v1485 = vadd.f32 %v1310, %v1453
        %v1486 = vadd.f32 %v1312, %v1454
        %v1487 = vadd.f32 %v1314, %v1455
        %v1488 = vadd.f32 %v1318, %v1456
        %v1489 = vadd.f32 %v1320, %v1457
        %v1490 = vadd.f32 %v1322, %v1458
        %v1491 = vadd.f32 %v1324, %v1459
        %v1492 = vadd.f32 %v1328, %v1460
        %v1493 = vadd.f32 %v1330, %v1461
        %v1494 = vadd.f32 %v1332, %v1462
        %v1495 = vadd.f32 %v1334, %v1463
        %v1496 = vmul.f32 %v1464, 0.7978846
        %v1497 = vmul.f32 %v1465, 0.7978846
        %v1498 = vmul.f32 %v1466, 0.7978846
        %v1499 = vmul.f32 %v1467, 0.7978846
        %v1500 = vmul.f32 %v1468, 0.7978846
        %v1501 = vmul.f32 %v1469, 0.7978846
        %v1502 = vmul.f32 %v1470, 0.7978846
        %v1503 = vmul.f32 %v1471, 0.7978846
        %v1504 = vmul.f32 %v1472, 0.7978846
        %v1505 = vmul.f32 %v1473, 0.7978846
        %v1506 = vmul.f32 %v1474, 0.7978846
        %v1507 = vmul.f32 %v1475, 0.7978846
        %v1508 = vmul.f32 %v1476, 0.7978846
        %v1509 = vmul.f32 %v1477, 0.7978846
        %v1510 = vmul.f32 %v1478, 0.7978846
        %v1511 = vmul.f32 %v1479, 0.7978846
        %v1512 = vmul.f32 %v1480, 0.7978846
        %v1513 = vmul.f32 %v1481, 0.7978846
        %v1514 = vmul.f32 %v1482, 0.7978846
        %v1515 = vmul.f32 %v1483, 0.7978846
        %v1516 = vmul.f32 %v1484, 0.7978846
        %v1517 = vmul.f32 %v1485, 0.7978846
        %v1518 = vmul.f32 %v1486, 0.7978846
        %v1519 = vmul.f32 %v1487, 0.7978846
        %v1520 = vmul.f32 %v1488, 0.7978846
        %v1521 = vmul.f32 %v1489, 0.7978846
        %v1522 = vmul.f32 %v1490, 0.7978846
        %v1523 = vmul.f32 %v1491, 0.7978846
        %v1524 = vmul.f32 %v1492, 0.7978846
        %v1525 = vmul.f32 %v1493, 0.7978846
        %v1526 = vmul.f32 %v1494, 0.7978846
        %v1527 = vmul.f32 %v1495, 0.7978846
        %v1528 = vtanh.pop %v1496
        %v1529 = vtanh.pop %v1497
        %v1530 = vtanh.pop %v1498
        %v1531 = vtanh.pop %v1499
        %v1532 = vtanh.pop %v1500
        %v1533 = vtanh.pop %v1501
        %v1534 = vtanh.pop %v1502
        %v1535 = vtanh.pop %v1503
        %v1536 = vtanh.pop %v1504
        %v1537 = vtanh.pop %v1505
        %v1538 = vtanh.pop %v1506
        %v1539 = vtanh.pop %v1507
        %v1540 = vtanh.pop %v1508
        %v1541 = vtanh.pop %v1509
        %v1542 = vtanh.pop %v1510
        %v1543 = vtanh.pop %v1511
        %v1544 = vtanh.pop %v1512
        %v1545 = vtanh.pop %v1513
        %v1546 = vtanh.pop %v1514
        %v1547 = vtanh.pop %v1515
        %v1548 = vtanh.pop %v1516
        %v1549 = vtanh.pop %v1517
        %v1550 = vtanh.pop %v1518
        %v1551 = vtanh.pop %v1519
        %v1552 = vtanh.pop %v1520
        %v1553 = vtanh.pop %v1521
        %v1554 = vtanh.pop %v1522
        %v1555 = vtanh.pop %v1523
        %v1556 = vtanh.pop %v1524
        %v1557 = vtanh.pop %v1525
        %v1558 = vtanh.pop %v1526
        %v1559 = vtanh.pop %v1527
        %v1560 = vadd.f32 %v1528, 1.0
        %v1561 = vadd.f32 %v1529, 1.0
        %v1562 = vadd.f32 %v1530, 1.0
        %v1563 = vadd.f32 %v1531, 1.0
        %v1564 = vadd.f32 %v1532, 1.0
        %v1565 = vadd.f32 %v1533, 1.0
        %v1566 = vadd.f32 %v1534, 1.0
        %v1567 = vadd.f32 %v1535, 1.0
        %v1568 = vadd.f32 %v1536, 1.0
        %v1569 = vadd.f32 %v1537, 1.0
        %v1570 = vadd.f32 %v1538, 1.0
        %v1571 = vadd.f32 %v1539, 1.0
        %v1572 = vadd.f32 %v1540, 1.0
        %v1573 = vadd.f32 %v1541, 1.0
        %v1574 = vadd.f32 %v1542, 1.0
        %v1575 = vadd.f32 %v1543, 1.0
        %v1576 = vadd.f32 %v1544, 1.0
        %v1577 = vadd.f32 %v1545, 1.0
        %v1578 = vadd.f32 %v1546, 1.0
        %v1579 = vadd.f32 %v1547, 1.0
        %v1580 = vadd.f32 %v1548, 1.0
        %v1581 = vadd.f32 %v1549, 1.0
        %v1582 = vadd.f32 %v1550, 1.0
        %v1583 = vadd.f32 %v1551, 1.0
        %v1584 = vadd.f32 %v1552, 1.0
        %v1585 = vadd.f32 %v1553, 1.0
        %v1586 = vadd.f32 %v1554, 1.0
        %v1587 = vadd.f32 %v1555, 1.0
        %v1588 = vadd.f32 %v1556, 1.0
        %v1589 = vadd.f32 %v1557, 1.0
        %v1590 = vadd.f32 %v1558, 1.0
        %v1591 = vadd.f32 %v1559, 1.0
        %v1592 = vmul.f32 %v1336, %v1560
        %v1593 = vmul.f32 %v1337, %v1561
        %v1594 = vmul.f32 %v1338, %v1562
        %v1595 = vmul.f32 %v1339, %v1563
        %v1596 = vmul.f32 %v1340, %v1564
        %v1597 = vmul.f32 %v1341, %v1565
        %v1598 = vmul.f32 %v1342, %v1566
        %v1599 = vmul.f32 %v1343, %v1567
        %v1600 = vmul.f32 %v1344, %v1568
        %v1601 = vmul.f32 %v1345, %v1569
        %v1602 = vmul.f32 %v1346, %v1570
        %v1603 = vmul.f32 %v1347, %v1571
        %v1604 = vmul.f32 %v1348, %v1572
        %v1605 = vmul.f32 %v1349, %v1573
        %v1606 = vmul.f32 %v1350, %v1574
        %v1607 = vmul.f32 %v1351, %v1575
        %v1608 = vmul.f32 %v1352, %v1576
        %v1609 = vmul.f32 %v1353, %v1577
        %v1610 = vmul.f32 %v1354, %v1578
        %v1611 = vmul.f32 %v1355, %v1579
        %v1612 = vmul.f32 %v1356, %v1580
        %v1613 = vmul.f32 %v1357, %v1581
        %v1614 = vmul.f32 %v1358, %v1582
        %v1615 = vmul.f32 %v1359, %v1583
        %v1616 = vmul.f32 %v1360, %v1584
        %v1617 = vmul.f32 %v1361, %v1585
        %v1618 = vmul.f32 %v1362, %v1586
        %v1619 = vmul.f32 %v1363, %v1587
        %v1620 = vmul.f32 %v1364, %v1588
        %v1621 = vmul.f32 %v1365, %v1589
        %v1622 = vmul.f32 %v1366, %v1590
        %v1623 = vmul.f32 %v1367, %v1591
        %v1624 = vpack.c.bf16 %v1594, %v1592
        %v1625 = vpack.c.bf16 %v1595, %v1593
        %v1626 = vpack.c.bf16 %v1598, %v1596
        %v1627 = vpack.c.bf16 %v1599, %v1597
        %v1628 = vpack.c.bf16 %v1602, %v1600
        %v1629 = vpack.c.bf16 %v1603, %v1601
        %v1630 = vpack.c.bf16 %v1606, %v1604
        %v1631 = vpack.c.bf16 %v1607, %v1605
        %v1632 = vpack.c.bf16 %v1610, %v1608
        %v1633 = vpack.c.bf16 %v1611, %v1609
        %v1634 = vpack.c.bf16 %v1614, %v1612
        %v1635 = vpack.c.bf16 %v1615, %v1613
        %v1636 = vpack.c.bf16 %v1618, %v1616
        %v1637 = vpack.c.bf16 %v1619, %v1617
        %v1638 = vpack.c.bf16 %v1622, %v1620
        %v1639 = vpack.c.bf16 %v1623, %v1621
        %v1640 = vld [vmem:[#allocation2] sm:$0xff]
        %v1641 = vld [vmem:[#allocation2 + $0x8] sm:$0xff]
        %v1642 = vld [vmem:[#allocation2 + $0x10] sm:$0xff]
        %v1643 = vld [vmem:[#allocation2 + $0x18] sm:$0xff]
        %v1644 = vld [vmem:[#allocation2 + $0x20] sm:$0xff]
        %v1645 = vld [vmem:[#allocation2 + $0x28] sm:$0xff]
        %v1646 = vld [vmem:[#allocation2 + $0x30] sm:$0xff]
        %v1647 = vld [vmem:[#allocation2 + $0x38] sm:$0xff]
        %v1648 = vld [vmem:[#allocation2 + $0x40] sm:$0xff]
        %v1649 = vld [vmem:[#allocation2 + $0x48] sm:$0xff]
        %v1650 = vld [vmem:[#allocation2 + $0x50] sm:$0xff]
        %v1651 = vld [vmem:[#allocation2 + $0x58] sm:$0xff]
        %v1652 = vld [vmem:[#allocation2 + $0x60] sm:$0xff]
        %v1653 = vld [vmem:[#allocation2 + $0x68] sm:$0xff]
        %v1654 = vld [vmem:[#allocation2 + $0x70] sm:$0xff]
        %v1655 = vld [vmem:[#allocation2 + $0x78] sm:$0xff]
        %s1656 = scalar_lea.vmem [#allocation8], 128
        %v1657 = vld [vmem:[%s1656] sm:$0xf]
        %v1658 = vld [vmem:[%s1656 + $0x4] sm:$0xf]
        %v1659 = vld [vmem:[%s1656 + $0x8] sm:$0xf]
        %v1660 = vld [vmem:[%s1656 + $0xc] sm:$0xf]
        %v1661 = vld [vmem:[%s1656 + $0x10] sm:$0xf]
        %v1662 = vld [vmem:[%s1656 + $0x14] sm:$0xf]
        %v1663 = vld [vmem:[%s1656 + $0x18] sm:$0xf]
        %v1664 = vld [vmem:[%s1656 + $0x1c] sm:$0xf]
        %v1665 = vld [vmem:[%s1656 + $0x20] sm:$0xf]
        %v1666 = vld [vmem:[%s1656 + $0x24] sm:$0xf]
        %v1667 = vld [vmem:[%s1656 + $0x28] sm:$0xf]
        %v1668 = vld [vmem:[%s1656 + $0x2c] sm:$0xf]
        %v1669 = vld [vmem:[%s1656 + $0x30] sm:$0xf]
        %v1670 = vld [vmem:[%s1656 + $0x34] sm:$0xf]
        %v1671 = vld [vmem:[%s1656 + $0x38] sm:$0xf]
        %v1672 = vld [vmem:[%s1656 + $0x3c] sm:$0xf]
        %v1673 = vld [vmem:[%s1656 + $0x40] sm:$0xf]
        %v1674 = vld [vmem:[%s1656 + $0x44] sm:$0xf]
        %v1675 = vld [vmem:[%s1656 + $0x48] sm:$0xf]
        %v1676 = vld [vmem:[%s1656 + $0x4c] sm:$0xf]
        %v1677 = vld [vmem:[%s1656 + $0x50] sm:$0xf]
        %v1678 = vld [vmem:[%s1656 + $0x54] sm:$0xf]
        %v1679 = vld [vmem:[%s1656 + $0x58] sm:$0xf]
        %v1680 = vld [vmem:[%s1656 + $0x5c] sm:$0xf]
        %v1681 = vld [vmem:[%s1656 + $0x60] sm:$0xf]
        %v1682 = vld [vmem:[%s1656 + $0x64] sm:$0xf]
        %v1683 = vld [vmem:[%s1656 + $0x68] sm:$0xf]
        %v1684 = vld [vmem:[%s1656 + $0x6c] sm:$0xf]
        %v1685 = vld [vmem:[%s1656 + $0x70] sm:$0xf]
        %v1686 = vld [vmem:[%s1656 + $0x74] sm:$0xf]
        %v1687 = vld [vmem:[%s1656 + $0x78] sm:$0xf]
        %v1688 = vld [vmem:[%s1656 + $0x7c] sm:$0xf]
        %v1721 = vunpack.c.l.b16 %v1657
        %v1722 = vunpack.c.l.b16 %v1658
        %v1723 = vunpack.c.l.b16 %v1659
        %v1724 = vunpack.c.l.b16 %v1660
        %v1725 = vunpack.c.l.b16 %v1661
        %v1726 = vunpack.c.l.b16 %v1662
        %v1727 = vunpack.c.l.b16 %v1663
        %v1728 = vunpack.c.l.b16 %v1664
        %v1729 = vunpack.c.l.b16 %v1665
        %v1730 = vunpack.c.l.b16 %v1666
        %v1731 = vunpack.c.l.b16 %v1667
        %v1732 = vunpack.c.l.b16 %v1668
        %v1733 = vunpack.c.l.b16 %v1669
        %v1734 = vunpack.c.l.b16 %v1670
        %v1735 = vunpack.c.l.b16 %v1671
        %v1736 = vunpack.c.l.b16 %v1672
        %v1737 = vunpack.c.l.b16 %v1673
        %v1738 = vunpack.c.l.b16 %v1674
        %v1739 = vunpack.c.l.b16 %v1675
        %v1740 = vunpack.c.l.b16 %v1676
        %v1741 = vunpack.c.l.b16 %v1677
        %v1742 = vunpack.c.l.b16 %v1678
        %v1743 = vunpack.c.l.b16 %v1679
        %v1744 = vunpack.c.l.b16 %v1680
        %v1745 = vunpack.c.l.b16 %v1681
        %v1746 = vunpack.c.l.b16 %v1682
        %v1747 = vunpack.c.l.b16 %v1683
        %v1748 = vunpack.c.l.b16 %v1684
        %v1749 = vunpack.c.l.b16 %v1685
        %v1750 = vunpack.c.l.b16 %v1686
        %v1751 = vunpack.c.l.b16 %v1687
        %v1752 = vunpack.c.l.b16 %v1688
        %v1753 = vpack.c.b16 %v1722, %v1721
        %v1754 = vpack.c.b16 %v1724, %v1723
        %v1755 = vpack.c.b16 %v1726, %v1725
        %v1756 = vpack.c.b16 %v1728, %v1727
        %v1757 = vpack.c.b16 %v1730, %v1729
        %v1758 = vpack.c.b16 %v1732, %v1731
        %v1759 = vpack.c.b16 %v1734, %v1733
        %v1760 = vpack.c.b16 %v1736, %v1735
        %v1761 = vpack.c.b16 %v1738, %v1737
        %v1762 = vpack.c.b16 %v1740, %v1739
        %v1763 = vpack.c.b16 %v1742, %v1741
        %v1764 = vpack.c.b16 %v1744, %v1743
        %v1765 = vpack.c.b16 %v1746, %v1745
        %v1766 = vpack.c.b16 %v1748, %v1747
        %v1767 = vpack.c.b16 %v1750, %v1749
        %v1768 = vpack.c.b16 %v1752, %v1751
        %1785 = vmatprep.subr.bf16.mxu0 0
        %1786 = vmatpush1.bf16.msra.mxu0 %v1753
        %1787 = vmatprep.subr.bf16.mxu0 0
        %1788 = vmatpush1.bf16.msra.mxu0 %v1754
        %1789 = vmatprep.subr.bf16.mxu0 0
        %1790 = vmatpush1.bf16.msra.mxu0 %v1755
        %1791 = vmatprep.subr.bf16.mxu0 0
        %1792 = vmatpush1.bf16.msra.mxu0 %v1756
        %1793 = vmatprep.subr.bf16.mxu0 0
        %1794 = vmatpush1.bf16.msra.mxu0 %v1757
        %1795 = vmatprep.subr.bf16.mxu0 0
        %1796 = vmatpush1.bf16.msra.mxu0 %v1758
        %1797 = vmatprep.subr.bf16.mxu0 0
        %1798 = vmatpush1.bf16.msra.mxu0 %v1759
        %1799 = vmatprep.subr.bf16.mxu0 0
        %1800 = vmatpush1.bf16.msra.mxu0 %v1760
        %1801 = vmatprep.subr.bf16.mxu0 0
        %1802 = vmatpush1.bf16.msra.mxu0 %v1761
        %1803 = vmatprep.subr.bf16.mxu0 0
        %1804 = vmatpush1.bf16.msra.mxu0 %v1762
        %1805 = vmatprep.subr.bf16.mxu0 0
        %1806 = vmatpush1.bf16.msra.mxu0 %v1763
        %1807 = vmatprep.subr.bf16.mxu0 0
        %1808 = vmatpush1.bf16.msra.mxu0 %v1764
        %1809 = vmatprep.subr.bf16.mxu0 0
        %1810 = vmatpush1.bf16.msra.mxu0 %v1765
        %1811 = vmatprep.subr.bf16.mxu0 0
        %1812 = vmatpush1.bf16.msra.mxu0 %v1766
        %1813 = vmatprep.subr.bf16.mxu0 0
        %1814 = vmatpush1.bf16.msra.mxu0 %v1767
        %1815 = vmatprep.subr.bf16.mxu0 0
        %1816 = vmatpush1.bf16.msra.mxu0 %v1768
        %1817 = vmatprep.mubr.bf16.mxu0 %v1625
        %1818 = vmatmul.mubr.bf16.gmra.mrb[0].mxu0 %v1624
        %v1819 = vpop.f32.mrb[0].mxu0
        %v1820 = vadd.f32 0.0, %v1819
        %v1821 = vpop.f32.mrb[0].mxu0
        %v1822 = vpop.f32.mrb[0].mxu0
        %v1823 = vadd.f32 0.0, %v1822
        %v1824 = vpop.f32.mrb[0].mxu0
        %1825 = vmatprep.mubr.bf16.mxu0 %v1627
        %1826 = vmatmul.mubr.bf16.gmra.mrb[0].mxu0 %v1626
        %v1827 = vpop.f32.mrb[0].mxu0
        %v1828 = vadd.f32 0.0, %v1827
        %v1829 = vpop.f32.mrb[0].mxu0
        %v1830 = vpop.f32.mrb[0].mxu0
        %v1831 = vadd.f32 0.0, %v1830
        %v1832 = vpop.f32.mrb[0].mxu0
        %1833 = vmatprep.mubr.bf16.mxu0 %v1629
        %1834 = vmatmul.mubr.bf16.gmra.mrb[0].mxu0 %v1628
        %v1835 = vpop.f32.mrb[0].mxu0
        %v1836 = vadd.f32 0.0, %v1835
        %v1837 = vpop.f32.mrb[0].mxu0
        %v1838 = vpop.f32.mrb[0].mxu0
        %v1839 = vadd.f32 0.0, %v1838
        %v1840 = vpop.f32.mrb[0].mxu0
        %1841 = vmatprep.mubr.bf16.mxu0 %v1631
        %1842 = vmatmul.mubr.bf16.gmra.mrb[0].mxu0 %v1630
        %v1843 = vpop.f32.mrb[0].mxu0
        %v1844 = vadd.f32 0.0, %v1843
        %v1845 = vpop.f32.mrb[0].mxu0
        %v1846 = vpop.f32.mrb[0].mxu0
        %v1847 = vadd.f32 0.0, %v1846
        %v1848 = vpop.f32.mrb[0].mxu0
        %1849 = vmatprep.mubr.bf16.mxu0 %v1633
        %1850 = vmatmul.mubr.bf16.gmra.mrb[0].mxu0 %v1632
        %v1851 = vpop.f32.mrb[0].mxu0
        %v1852 = vadd.f32 0.0, %v1851
        %v1853 = vpop.f32.mrb[0].mxu0
        %v1854 = vpop.f32.mrb[0].mxu0
        %v1855 = vadd.f32 0.0, %v1854
        %v1856 = vpop.f32.mrb[0].mxu0
        %1857 = vmatprep.mubr.bf16.mxu0 %v1635
        %1858 = vmatmul.mubr.bf16.gmra.mrb[0].mxu0 %v1634
        %v1859 = vpop.f32.mrb[0].mxu0
        %v1860 = vadd.f32 0.0, %v1859
        %v1861 = vpop.f32.mrb[0].mxu0
        %v1862 = vpop.f32.mrb[0].mxu0
        %v1863 = vadd.f32 0.0, %v1862
        %v1864 = vpop.f32.mrb[0].mxu0
        %1865 = vmatprep.mubr.bf16.mxu0 %v1637
        %1866 = vmatmul.mubr.bf16.gmra.mrb[0].mxu0 %v1636
        %v1867 = vpop.f32.mrb[0].mxu0
        %v1868 = vadd.f32 0.0, %v1867
        %v1869 = vpop.f32.mrb[0].mxu0
        %v1870 = vpop.f32.mrb[0].mxu0
        %v1871 = vadd.f32 0.0, %v1870
        %v1872 = vpop.f32.mrb[0].mxu0
        %1873 = vmatprep.mubr.bf16.mxu0 %v1639
        %1874 = vmatmul.mubr.bf16.gmra.mrb[0].mxu0 %v1638
        %v1875 = vpop.f32.mrb[0].mxu0
        %v1876 = vadd.f32 0.0, %v1875
        %v1877 = vpop.f32.mrb[0].mxu0
        %v1878 = vpop.f32.mrb[0].mxu0
        %v1879 = vadd.f32 0.0, %v1878
        %v1880 = vpop.f32.mrb[0].mxu0
        %1881 = vdwg.mxu0
        %v1882 = vadd.f32 %v1640, %v1820
        %v1883 = vadd.f32 %v1641, %v1823
        %v1884 = vadd.f32 %v1642, %v1828
        %v1885 = vadd.f32 %v1643, %v1831
        %v1886 = vadd.f32 %v1644, %v1836
        %v1887 = vadd.f32 %v1645, %v1839
        %v1888 = vadd.f32 %v1646, %v1844
        %v1889 = vadd.f32 %v1647, %v1847
        %v1890 = vadd.f32 %v1648, %v1852
        %v1891 = vadd.f32 %v1649, %v1855
        %v1892 = vadd.f32 %v1650, %v1860
        %v1893 = vadd.f32 %v1651, %v1863
        %v1894 = vadd.f32 %v1652, %v1868
        %v1895 = vadd.f32 %v1653, %v1871
        %v1896 = vadd.f32 %v1654, %v1876
        %v1897 = vadd.f32 %v1655, %v1879
        %1898 = vst [vmem:[#allocation2] sm:$0xff] %v1882
        %1899 = vst [vmem:[#allocation2 + $0x8] sm:$0xff] %v1883
        %1900 = vst [vmem:[#allocation2 + $0x10] sm:$0xff] %v1884
        %1901 = vst [vmem:[#allocation2 + $0x18] sm:$0xff] %v1885
        %1902 = vst [vmem:[#allocation2 + $0x20] sm:$0xff] %v1886
        %1903 = vst [vmem:[#allocation2 + $0x28] sm:$0xff] %v1887
        %1904 = vst [vmem:[#allocation2 + $0x30] sm:$0xff] %v1888
        %1905 = vst [vmem:[#allocation2 + $0x38] sm:$0xff] %v1889
        %1906 = vst [vmem:[#allocation2 + $0x40] sm:$0xff] %v1890
        %1907 = vst [vmem:[#allocation2 + $0x48] sm:$0xff] %v1891
        %1908 = vst [vmem:[#allocation2 + $0x50] sm:$0xff] %v1892
        %1909 = vst [vmem:[#allocation2 + $0x58] sm:$0xff] %v1893
        %1910 = vst [vmem:[#allocation2 + $0x60] sm:$0xff] %v1894
        %1911 = vst [vmem:[#allocation2 + $0x68] sm:$0xff] %v1895
        %1912 = vst [vmem:[#allocation2 + $0x70] sm:$0xff] %v1896
        %1913 = vst [vmem:[#allocation2 + $0x78] sm:$0xff] %v1897
        %v1914 = vld [vmem:[#allocation2] sm:$0xff]
        %v1915 = vld [vmem:[#allocation2 + $0x8] sm:$0xff]
        %v1916 = vld [vmem:[#allocation2 + $0x10] sm:$0xff]
        %v1917 = vld [vmem:[#allocation2 + $0x18] sm:$0xff]
        %v1918 = vld [vmem:[#allocation2 + $0x20] sm:$0xff]
        %v1919 = vld [vmem:[#allocation2 + $0x28] sm:$0xff]
        %v1920 = vld [vmem:[#allocation2 + $0x30] sm:$0xff]
        %v1921 = vld [vmem:[#allocation2 + $0x38] sm:$0xff]
        %v1922 = vld [vmem:[#allocation2 + $0x40] sm:$0xff]
        %v1923 = vld [vmem:[#allocation2 + $0x48] sm:$0xff]
        %v1924 = vld [vmem:[#allocation2 + $0x50] sm:$0xff]
        %v1925 = vld [vmem:[#allocation2 + $0x58] sm:$0xff]
        %v1926 = vld [vmem:[#allocation2 + $0x60] sm:$0xff]
        %v1927 = vld [vmem:[#allocation2 + $0x68] sm:$0xff]
        %v1928 = vld [vmem:[#allocation2 + $0x70] sm:$0xff]
        %v1929 = vld [vmem:[#allocation2 + $0x78] sm:$0xff]
        %v1930 = vld [vmem:[%s4] sm:$0x1]
        %v1932 = vlaneseq
        %v1933 = vshrl.u32 %v1932, 7
        %v1934 = vsub.s32 0, %v1933
        %v1935 = vrot.slane %v1930, %v1934
        %v1937 = vadd.f32 %v1914, %v1935
        %v1938 = vadd.f32 %v1915, %v1935
        %v1939 = vadd.f32 %v1916, %v1935
        %v1940 = vadd.f32 %v1917, %v1935
        %v1941 = vadd.f32 %v1918, %v1935
        %v1942 = vadd.f32 %v1919, %v1935
        %v1943 = vadd.f32 %v1920, %v1935
        %v1944 = vadd.f32 %v1921, %v1935
        %v1945 = vadd.f32 %v1922, %v1935
        %v1946 = vadd.f32 %v1923, %v1935
        %v1947 = vadd.f32 %v1924, %v1935
        %v1948 = vadd.f32 %v1925, %v1935
        %v1949 = vadd.f32 %v1926, %v1935
        %v1950 = vadd.f32 %v1927, %v1935
        %v1951 = vadd.f32 %v1928, %v1935
        %v1952 = vadd.f32 %v1929, %v1935
        %1953 = vst [vmem:[%s271] sm:$0xff] %v1937
        %1954 = vst [vmem:[%s271 + $0x8] sm:$0xff] %v1938
        %1955 = vst [vmem:[%s271 + $0x10] sm:$0xff] %v1939
        %1956 = vst [vmem:[%s271 + $0x18] sm:$0xff] %v1940
        %1957 = vst [vmem:[%s271 + $0x20] sm:$0xff] %v1941
        %1958 = vst [vmem:[%s271 + $0x28] sm:$0xff] %v1942
        %1959 = vst [vmem:[%s271 + $0x30] sm:$0xff] %v1943
        %1960 = vst [vmem:[%s271 + $0x38] sm:$0xff] %v1944
        %1961 = vst [vmem:[%s271 + $0x40] sm:$0xff] %v1945
        %1962 = vst [vmem:[%s271 + $0x48] sm:$0xff] %v1946
        %1963 = vst [vmem:[%s271 + $0x50] sm:$0xff] %v1947
        %1964 = vst [vmem:[%s271 + $0x58] sm:$0xff] %v1948
        %1965 = vst [vmem:[%s271 + $0x60] sm:$0xff] %v1949
        %1966 = vst [vmem:[%s271 + $0x68] sm:$0xff] %v1950
        %1967 = vst [vmem:[%s271 + $0x70] sm:$0xff] %v1951
        %1968 = vst [vmem:[%s271 + $0x78] sm:$0xff] %v1952
        %s1969 = sand.u32 %s141, 1
        %s1970 = scalar_lea.sflag [#allocation5], %s1969
        %s1971 = sand.u32 %s141, 1
        %s1972 = smul.addr %s1971, 128
        %s1973 = scalar_lea.vmem [#allocation9], %s1972
        // Predicated region
        $region53: #{mlp_forward.1} parent=39 // pred_check
          %p1974 = pneg %p151
        $region54: #{mlp_forward.1} parent=39 // pred_check_branch
          %1976 = sbr.rel (%p1974) target = $region56
        $region55: #{mlp_forward.1} parent=39 // pred_region
          %s1977 = smul.u32 16, %s23
          %s1979 = ssub.s32 2048, 2048
          %1980 = vsyncadd %s1970, %s1979
          %s1981 = smul.addr %s1977, 128
          %s1982 = scalar_lea.hbm %s5, %s1981
          %s1983 = sshll.u32 %s1973, 4
          %s1984 = int_to_ptr.vmem [resolvable:$true] %s1983
          %1989 = dma.vmem_to_hbm [thread:$0]  %s1984, 2048, %s1982, %s1970, 128, 128, 8
        $region56: #{mlp_forward.1} parent=39 // pred_fallthru
          _
      $region40: #{mlp_forward.1} parent=5 // pred_fallthru
        _
      %p1990 = scmp.le.s32.totalorder 2, %s18
      // Predicated region
      $region57: #{mlp_forward.1} parent=5 // pred_check
        %p1991 = pneg %p1990
      $region58: #{mlp_forward.1} parent=5 // pred_check_branch
        %1993 = sbr.rel (%p1991) target = $region60
      $region59: #{mlp_forward.1} parent=5 // pred_region
        %s1994 = ssub.s32 %s18, 2
        // Predicated region
        $region61: #{mlp_forward.1} parent=59 // pred_check
          %p1995 = pneg %p157
        $region62: #{mlp_forward.1} parent=59 // pred_check_branch
          %1997 = sbr.rel (%p1995) target = $region64
        $region63: #{mlp_forward.1} parent=59 // pred_region
          %s1998 = sand.u32 %s142, 1
          %s1999 = scalar_lea.sflag [#allocation5], %s1998
          %s2000 = sand.u32 %s142, 1
          %s2001 = smul.addr %s2000, 128
          %s2002 = scalar_lea.vmem [#allocation9], %s2001
          %2003 = dma.done %s1999, 2048
        $region64: #{mlp_forward.1} parent=59 // pred_fallthru
          _
      $region60: #{mlp_forward.1} parent=5 // pred_fallthru
        _
    $region6: #{mlp_forward.1} parent=1 // loop_footer
      %s22 = sadd.s32 1, %s18
    $region7: #{mlp_forward.1} parent=1 // loop_footer_branch
      %17 = sbr.rel target = $region3
    $region8: #{mlp_forward.1} parent=1 // loop_exit
      _
    %2004 = vsyncpa [#allocation4], 1
    %s2005 = scalar_lea.sflag [#allocation4], 1
    %2006 = vsyncpa %s2005, 1
    %2007 = vsyncpa [#allocation7], 1
    %2008 = vsyncpa [#allocation5], 1
    %s2009 = scalar_lea.sflag [#allocation5], 1
    %2010 = vsyncpa %s2009, 1

</llo_original>
